<compile_context>
chip_gen: v7x
topology: tpu7x:2x2x1
jax: 0.10.0
libtpu: 0.0.40
codegen_flags: <defaults>
</compile_context>

<pallas_src>
import functools

import numpy as np
import jax
import jax.numpy as jnp
from jax.experimental import pallas as pl
from jax.experimental.pallas import tpu as pltpu


# ---------------------------------------------------------------------------
# Fused kernel: whole decoder for one batch element, VMEM/vreg resident.
#
# Invariant carried between layers (all in the (C, N) layout):
#   x_aug = [[ y   ],   y[:, j]   = signal[p(j)]
#            [ y_s ]]   y_s[:, j] = signal[p(j) + 1]     (zero past the end)
# One matmul with W_eff gives res = [even; odd; odd_shift] where
#   even      = out[2p]     = W1^T y
#   odd       = out[2p + 1] = W2^T y + W0^T y_s
#   odd_shift = out[2p + 2] = W1^T y_s
# and the next layer's x_aug is [ res[0:2C] | res[C:3C] ] (columns doubled).
# Each new layer appends its phase bit as the most-significant column bit, so
# the final column order is bit-reversed-phase-major; fixed up outside.
# ---------------------------------------------------------------------------
def _fused_decoder_kernel(z_ref, w_in_ref, b_in_ref, w_mid_ref, w_last_ref,
                          o_ref, *, n_up, channels):
    f32 = jnp.float32
    c = channels

    # Layer 0: 1x1 transposed conv (== dense) + bias + ReLU, (C, l0) layout.
    y0 = jnp.dot(w_in_ref[...], z_ref[0], preferred_element_type=f32)
    y0 = jnp.maximum(y0 + b_in_ref[...], 0.0)                       # (C, l0)

    # One-time shifted companion y0_s[:, q] = y0[:, q+1] (0 at the last column),
    # built with a tiny sub-diagonal shift matmul (no unaligned lane slicing).
    l0 = y0.shape[1]
    row = jax.lax.broadcasted_iota(jnp.int32, (l0, l0), 0)
    col = jax.lax.broadcasted_iota(jnp.int32, (l0, l0), 1)
    shift = (row == col + 1).astype(f32)                            # (l0, l0)
    y0_s = jnp.dot(y0, shift, preferred_element_type=f32)           # (C, l0)

    x_aug = jnp.concatenate([y0, y0_s], axis=0)                     # (2C, l0)

    # Interior upconv layers: one MXU matmul + ReLU + ONE lane concat each.
    for layer in range(n_up - 1):
        w_eff = w_mid_ref[layer]                                    # (3C, 2C)
        res = jnp.dot(w_eff, x_aug, preferred_element_type=f32)     # (3C, M)
        res = jnp.maximum(res, 0.0)
        # next x_aug = [[even | odd], [odd | odd_shift]] == [res[0:2C] | res[C:3C]]
        x_aug = jnp.concatenate([res[0:2 * c, :], res[c:3 * c, :]], axis=1)

    # Final upconv (no ReLU, no companion needed): [even | odd] along lanes.
    res = jnp.dot(w_last_ref[...], x_aug, preferred_element_type=f32)
    c_out = res.shape[0] // 2
    out = jnp.concatenate([res[0:c_out, :], res[c_out:, :]], axis=1)
    o_ref[0] = out.astype(o_ref.dtype)                     # (c_out, 2**n_up*l0)


# ---------------------------------------------------------------------------
# Wrapper
# ---------------------------------------------------------------------------
def _augment_weight(w, *, last):
    # w: PyTorch ConvTranspose1d weight (Cin, Cout, 3) ->
    #   W_eff such that W_eff @ [y; y_shift] = [even; odd(; odd_shift)].
    w0, w1, w2 = w[:, :, 0].T, w[:, :, 1].T, w[:, :, 2].T           # (Cout, Cin)
    zero = jnp.zeros_like(w0)
    rows = [jnp.concatenate([w1, zero], axis=1),
            jnp.concatenate([w2, w0], axis=1)]
    if not last:
        rows.append(jnp.concatenate([zero, w1], axis=1))
    return jnp.concatenate(rows, axis=0)


def _bit_reverse_perm(n_bits):
    idx = np.arange(1 << n_bits)
    rev = np.zeros_like(idx)
    for b in range(n_bits):
        rev |= ((idx >> b) & 1) << (n_bits - 1 - b)
    return rev


def decoder2_forward(z, params):
    # z: (B, L, embedding_dim)  ->  (B, in_channels, L * 2**n_up)   (NCL)
    B, l0, e = z.shape
    w_in_t = params["w_in"].T                          # (C, E)
    b_in = params["b_in"].reshape(-1, 1)               # (C, 1)
    ws = params["ws"]
    n_up = len(ws)
    c = w_in_t.shape[0]
    c_out = ws[-1].shape[1]
    n_out = l0 * (2 ** n_up)

    if n_up >= 2:
        w_mid = jnp.stack([_augment_weight(w, last=False) for w in ws[:-1]])
    else:
        w_mid = jnp.zeros((1, 3 * c, 2 * c), jnp.float32)   # unused placeholder
    w_last = _augment_weight(ws[-1], last=True)             # (2*c_out, 2C)

    # One tiny transpose so the kernel's first matmul operands are already in
    # the channel-on-sublane / length-on-lane layout.
    z_t = jnp.transpose(z, (0, 2, 1))                        # (B, E, l0)

    res = pl.pallas_call(
        functools.partial(_fused_decoder_kernel, n_up=n_up, channels=c),
        out_shape=jax.ShapeDtypeStruct((B, c_out, n_out), z.dtype),
        grid=(B,),
        in_specs=[
            pl.BlockSpec((1, e, l0), lambda b: (b, 0, 0)),
            pl.BlockSpec((c, e), lambda b: (0, 0)),
            pl.BlockSpec((c, 1), lambda b: (0, 0)),
            pl.BlockSpec(w_mid.shape, lambda b: (0, 0, 0)),
            pl.BlockSpec((2 * c_out, 2 * c), lambda b: (0, 0)),
        ],
        # Lane-dense output block: last dim = l0 * 2**n_up (multiple of 128).
        out_specs=pl.BlockSpec((1, c_out, n_out), lambda b: (b, 0, 0)),
        compiler_params=pltpu.CompilerParams(
            dimension_semantics=("parallel",),
            vmem_limit_bytes=32 * 1024 * 1024,   # raise for larger channel counts
        ),
    )(z_t, w_in_t, b_in, w_mid, w_last)

    # Undo the bit-reversed-phase-major column order (tiny, done once in XLA):
    #   res[b, cc, P * l0 + q] == output[b, cc, q * 2**n_up + bitrev(P)]
    rev = jnp.asarray(_bit_reverse_perm(n_up))
    res = res.reshape(B, c_out, 2 ** n_up, l0)
    res = jnp.take(res, rev, axis=2)                         # (B, c_out, 2^n, l0)
    return jnp.transpose(res, (0, 1, 3, 2)).reshape(B, c_out, n_out)


# ---------------------------------------------------------------------------
# Parameters
# ---------------------------------------------------------------------------
def init_params(key, in_channels, channels, embedding_dim, n_up=8):
    keys = jax.random.split(key, n_up + 2)
    w_in = 0.2 * jax.random.normal(keys[0], (embedding_dim, channels), jnp.float32)
    b_in = 0.1 * jax.random.normal(keys[1], (channels,), jnp.float32)
    ws = []
    c_in = channels
    for i in range(n_up):
        c_out = channels if i < n_up - 1 else in_channels
        ws.append(0.2 * jax.random.normal(keys[2 + i], (c_in, c_out, 3), jnp.float32))
        c_in = c_out
    return {"w_in": w_in, "b_in": b_in, "ws": ws}


# ---------------------------------------------------------------------------
# Pure-JAX reference (correctness check only)
# ---------------------------------------------------------------------------
def _ref_conv_transpose1d(x_ncl, w_iok, bias, stride, padding, output_padding):
    k = w_iok.shape[2]
    w_oik = jnp.transpose(jnp.flip(w_iok, axis=2), (1, 0, 2))
    pad = (k - 1 - padding, k - 1 - padding + output_padding)
    out = jax.lax.conv_general_dilated(
        x_ncl, w_oik, window_strides=(1,), padding=[pad],
        lhs_dilation=(stride,), rhs_dilation=(1,),
        dimension_numbers=("NCH", "OIH", "NCH"),
        precision=jax.lax.Precision.HIGHEST)
    if bias is not None:
        out = out + bias[None, :, None]
    return out


def decoder2_reference(z, params):
    x = jnp.transpose(z, (0, 2, 1))                       # (B, E, L)
    x = _ref_conv_transpose1d(x, params["w_in"][:, :, None], params["b_in"], 1, 0, 0)
    x = jax.nn.relu(x)
    n = len(params["ws"])
    for i, w in enumerate(params["ws"]):
        x = _ref_conv_transpose1d(x, w, None, 2, 1, 1)
        if i < n - 1:
            x = jax.nn.relu(x)
    return x


# ---------------------------------------------------------------------------
if __name__ == "__main__":
    in_channels, channels, embedding_dim = 4, 16, 32
    B, L = 2, 8

    key = jax.random.PRNGKey(0)
    kz, kp = jax.random.split(key)
    z = jax.random.normal(kz, (B, L, embedding_dim), jnp.float32)
    params = init_params(kp, in_channels, channels, embedding_dim)

    out = jax.block_until_ready(decoder2_forward(z, params))

    # 8 stride-2 transposed convs -> 2**8 upsampling, output is NCL.
    assert out.shape == (B, in_channels, L * 2 ** 8), out.shape

    ref = decoder2_reference(z, params)
    if not bool(jnp.allclose(out, ref, atol=1e-4, rtol=1e-4)):
        max_err = float(jnp.max(jnp.abs(out - ref)))
        raise AssertionError(
            f"Pallas Decoder2 output mismatch vs reference (max abs err {max_err})")

    print("KERNEL_OK")
</pallas_src>

<mosaic_0001>
module attributes {stable_mosaic.version = 11 : i64} {
  func.func @_fused_decoder_kernel(%arg0: i32, %arg1: memref<1x32x8xf32, #tpu.memory_space<vmem>>, %arg2: memref<16x32xf32, #tpu.memory_space<vmem>>, %arg3: memref<16x1xf32, #tpu.memory_space<vmem>>, %arg4: memref<7x48x32xf32, #tpu.memory_space<vmem>>, %arg5: memref<8x32xf32, #tpu.memory_space<vmem>>, %arg6: memref<1x4x2048xf32, #tpu.memory_space<vmem>>) attributes {dimension_semantics = [#tpu.dimension_semantics<parallel>], iteration_bounds = array<i64: 2>, scalar_prefetch = 0 : i64, scratch_operands = 0 : i64, tpu.core_type = #tpu.core_type<tc>, window_params = [{transform_indices = @transform_0, window_bounds = array<i64: 1, 32, 8>}, {pipeline_mode = #tpu.pipeline_mode<synchronous>, transform_indices = @transform_1, window_bounds = array<i64: 16, 32>}, {pipeline_mode = #tpu.pipeline_mode<synchronous>, transform_indices = @transform_2, window_bounds = array<i64: 16, 1>}, {pipeline_mode = #tpu.pipeline_mode<synchronous>, transform_indices = @transform_3, window_bounds = array<i64: 7, 48, 32>}, {pipeline_mode = #tpu.pipeline_mode<synchronous>, transform_indices = @transform_4, window_bounds = array<i64: 8, 32>}, {transform_indices = @transform_5, window_bounds = array<i64: 1, 4, 2048>}]} {
    %c0 = arith.constant 0 : index
    %c0_0 = arith.constant 0 : index
    %0 = vector.load %arg2[%c0, %c0_0] : memref<16x32xf32, #tpu.memory_space<vmem>>, vector<16x32xf32>
    %c0_1 = arith.constant 0 : index
    %c0_2 = arith.constant 0 : index
    %c0_3 = arith.constant 0 : index
    %1 = vector.load %arg1[%c0_1, %c0_2, %c0_3] : memref<1x32x8xf32, #tpu.memory_space<vmem>>, vector<1x32x8xf32>
    %2 = vector.shape_cast %1 : vector<1x32x8xf32> to vector<32x8xf32>
    %cst = arith.constant dense<0.000000e+00> : vector<16x8xf32>
    %3 = tpu.matmul %0, %2, %cst {dimension_numbers = #tpu.dot_dimension_numbers<[1], [0], [0], [1], [0, 0, 1, 1], [], []>} : vector<16x32xf32>, vector<32x8xf32>, vector<16x8xf32> -> vector<16x8xf32>
    %c0_4 = arith.constant 0 : index
    %c0_5 = arith.constant 0 : index
    %4 = vector.load %arg3[%c0_4, %c0_5] : memref<16x1xf32, #tpu.memory_space<vmem>>, vector<16x1xf32>
    %5 = vector.broadcast %4 : vector<16x1xf32> to vector<16x8xf32>
    %6 = arith.addf %3, %5 : vector<16x8xf32>
    %cst_6 = arith.constant 0.000000e+00 : f32
    %7 = vector.broadcast %cst_6 : f32 to vector<16x8xf32>
    %8 = arith.maximumf %6, %7 : vector<16x8xf32>
    %9 = tpu.iota {dimensions = array<i32: 0>} : vector<8x8xi32>
    %10 = tpu.iota {dimensions = array<i32: 1>} : vector<8x8xi32>
    %c1_i32 = arith.constant 1 : i32
    %11 = vector.broadcast %c1_i32 : i32 to vector<8x8xi32>
    %12 = arith.addi %10, %11 : vector<8x8xi32>
    %13 = arith.cmpi eq, %9, %12 : vector<8x8xi32>
    %14 = arith.extui %13 : vector<8x8xi1> to vector<8x8xi32>
    %15 = arith.sitofp %14 : vector<8x8xi32> to vector<8x8xf32>
    %cst_7 = arith.constant dense<0.000000e+00> : vector<16x8xf32>
    %16 = tpu.matmul %8, %15, %cst_7 {dimension_numbers = #tpu.dot_dimension_numbers<[1], [0], [0], [1], [0, 0, 1, 1], [], []>} : vector<16x8xf32>, vector<8x8xf32>, vector<16x8xf32> -> vector<16x8xf32>
    %17 = tpu.concatenate %8, %16 in 0 : vector<16x8xf32>, vector<16x8xf32> -> vector<32x8xf32>
    %c0_8 = arith.constant 0 : index
    %c0_9 = arith.constant 0 : index
    %c0_10 = arith.constant 0 : index
    %18 = vector.load %arg4[%c0_8, %c0_9, %c0_10] : memref<7x48x32xf32, #tpu.memory_space<vmem>>, vector<1x48x32xf32>
    %19 = vector.shape_cast %18 : vector<1x48x32xf32> to vector<48x32xf32>
    %cst_11 = arith.constant dense<0.000000e+00> : vector<48x8xf32>
    %20 = tpu.matmul %19, %17, %cst_11 {dimension_numbers = #tpu.dot_dimension_numbers<[1], [0], [0], [1], [0, 0, 1, 1], [], []>} : vector<48x32xf32>, vector<32x8xf32>, vector<48x8xf32> -> vector<48x8xf32>
    %cst_12 = arith.constant 0.000000e+00 : f32
    %21 = vector.broadcast %cst_12 : f32 to vector<48x8xf32>
    %22 = arith.maximumf %20, %21 : vector<48x8xf32>
    %23 = vector.extract_strided_slice %22 {offsets = [0, 0], sizes = [32, 8], strides = [1, 1]} : vector<48x8xf32> to vector<32x8xf32>
    %24 = vector.extract_strided_slice %22 {offsets = [16, 0], sizes = [32, 8], strides = [1, 1]} : vector<48x8xf32> to vector<32x8xf32>
    %25 = tpu.concatenate %23, %24 in 1 : vector<32x8xf32>, vector<32x8xf32> -> vector<32x16xf32>
    %c1 = arith.constant 1 : index
    %c0_13 = arith.constant 0 : index
    %c0_14 = arith.constant 0 : index
    %26 = vector.load %arg4[%c1, %c0_13, %c0_14] : memref<7x48x32xf32, #tpu.memory_space<vmem>>, vector<1x48x32xf32>
    %27 = vector.shape_cast %26 : vector<1x48x32xf32> to vector<48x32xf32>
    %cst_15 = arith.constant dense<0.000000e+00> : vector<48x16xf32>
    %28 = tpu.matmul %27, %25, %cst_15 {dimension_numbers = #tpu.dot_dimension_numbers<[1], [0], [0], [1], [0, 0, 1, 1], [], []>} : vector<48x32xf32>, vector<32x16xf32>, vector<48x16xf32> -> vector<48x16xf32>
    %cst_16 = arith.constant 0.000000e+00 : f32
    %29 = vector.broadcast %cst_16 : f32 to vector<48x16xf32>
    %30 = arith.maximumf %28, %29 : vector<48x16xf32>
    %31 = vector.extract_strided_slice %30 {offsets = [0, 0], sizes = [32, 16], strides = [1, 1]} : vector<48x16xf32> to vector<32x16xf32>
    %32 = vector.extract_strided_slice %30 {offsets = [16, 0], sizes = [32, 16], strides = [1, 1]} : vector<48x16xf32> to vector<32x16xf32>
    %33 = tpu.concatenate %31, %32 in 1 : vector<32x16xf32>, vector<32x16xf32> -> vector<32x32xf32>
    %c2 = arith.constant 2 : index
    %c0_17 = arith.constant 0 : index
    %c0_18 = arith.constant 0 : index
    %34 = vector.load %arg4[%c2, %c0_17, %c0_18] : memref<7x48x32xf32, #tpu.memory_space<vmem>>, vector<1x48x32xf32>
    %35 = vector.shape_cast %34 : vector<1x48x32xf32> to vector<48x32xf32>
    %cst_19 = arith.constant dense<0.000000e+00> : vector<48x32xf32>
    %36 = tpu.matmul %35, %33, %cst_19 {dimension_numbers = #tpu.dot_dimension_numbers<[1], [0], [0], [1], [0, 0, 1, 1], [], []>} : vector<48x32xf32>, vector<32x32xf32>, vector<48x32xf32> -> vector<48x32xf32>
    %cst_20 = arith.constant 0.000000e+00 : f32
    %37 = vector.broadcast %cst_20 : f32 to vector<48x32xf32>
    %38 = arith.maximumf %36, %37 : vector<48x32xf32>
    %39 = vector.extract_strided_slice %38 {offsets = [0, 0], sizes = [32, 32], strides = [1, 1]} : vector<48x32xf32> to vector<32x32xf32>
    %40 = vector.extract_strided_slice %38 {offsets = [16, 0], sizes = [32, 32], strides = [1, 1]} : vector<48x32xf32> to vector<32x32xf32>
    %41 = tpu.concatenate %39, %40 in 1 : vector<32x32xf32>, vector<32x32xf32> -> vector<32x64xf32>
    %c3 = arith.constant 3 : index
    %c0_21 = arith.constant 0 : index
    %c0_22 = arith.constant 0 : index
    %42 = vector.load %arg4[%c3, %c0_21, %c0_22] : memref<7x48x32xf32, #tpu.memory_space<vmem>>, vector<1x48x32xf32>
    %43 = vector.shape_cast %42 : vector<1x48x32xf32> to vector<48x32xf32>
    %cst_23 = arith.constant dense<0.000000e+00> : vector<48x64xf32>
    %44 = tpu.matmul %43, %41, %cst_23 {dimension_numbers = #tpu.dot_dimension_numbers<[1], [0], [0], [1], [0, 0, 1, 1], [], []>} : vector<48x32xf32>, vector<32x64xf32>, vector<48x64xf32> -> vector<48x64xf32>
    %cst_24 = arith.constant 0.000000e+00 : f32
    %45 = vector.broadcast %cst_24 : f32 to vector<48x64xf32>
    %46 = arith.maximumf %44, %45 : vector<48x64xf32>
    %47 = vector.extract_strided_slice %46 {offsets = [0, 0], sizes = [32, 64], strides = [1, 1]} : vector<48x64xf32> to vector<32x64xf32>
    %48 = vector.extract_strided_slice %46 {offsets = [16, 0], sizes = [32, 64], strides = [1, 1]} : vector<48x64xf32> to vector<32x64xf32>
    %49 = tpu.concatenate %47, %48 in 1 : vector<32x64xf32>, vector<32x64xf32> -> vector<32x128xf32>
    %c4 = arith.constant 4 : index
    %c0_25 = arith.constant 0 : index
    %c0_26 = arith.constant 0 : index
    %50 = vector.load %arg4[%c4, %c0_25, %c0_26] : memref<7x48x32xf32, #tpu.memory_space<vmem>>, vector<1x48x32xf32>
    %51 = vector.shape_cast %50 : vector<1x48x32xf32> to vector<48x32xf32>
    %cst_27 = arith.constant dense<0.000000e+00> : vector<48x128xf32>
    %52 = tpu.matmul %51, %49, %cst_27 {dimension_numbers = #tpu.dot_dimension_numbers<[1], [0], [0], [1], [0, 0, 1, 1], [], []>} : vector<48x32xf32>, vector<32x128xf32>, vector<48x128xf32> -> vector<48x128xf32>
    %cst_28 = arith.constant 0.000000e+00 : f32
    %53 = vector.broadcast %cst_28 : f32 to vector<48x128xf32>
    %54 = arith.maximumf %52, %53 : vector<48x128xf32>
    %55 = vector.extract_strided_slice %54 {offsets = [0, 0], sizes = [32, 128], strides = [1, 1]} : vector<48x128xf32> to vector<32x128xf32>
    %56 = vector.extract_strided_slice %54 {offsets = [16, 0], sizes = [32, 128], strides = [1, 1]} : vector<48x128xf32> to vector<32x128xf32>
    %57 = tpu.concatenate %55, %56 in 1 : vector<32x128xf32>, vector<32x128xf32> -> vector<32x256xf32>
    %c5 = arith.constant 5 : index
    %c0_29 = arith.constant 0 : index
    %c0_30 = arith.constant 0 : index
    %58 = vector.load %arg4[%c5, %c0_29, %c0_30] : memref<7x48x32xf32, #tpu.memory_space<vmem>>, vector<1x48x32xf32>
    %59 = vector.shape_cast %58 : vector<1x48x32xf32> to vector<48x32xf32>
    %cst_31 = arith.constant dense<0.000000e+00> : vector<48x256xf32>
    %60 = tpu.matmul %59, %57, %cst_31 {dimension_numbers = #tpu.dot_dimension_numbers<[1], [0], [0], [1], [0, 0, 1, 1], [], []>} : vector<48x32xf32>, vector<32x256xf32>, vector<48x256xf32> -> vector<48x256xf32>
    %cst_32 = arith.constant 0.000000e+00 : f32
    %61 = vector.broadcast %cst_32 : f32 to vector<48x256xf32>
    %62 = arith.maximumf %60, %61 : vector<48x256xf32>
    %63 = vector.extract_strided_slice %62 {offsets = [0, 0], sizes = [32, 256], strides = [1, 1]} : vector<48x256xf32> to vector<32x256xf32>
    %64 = vector.extract_strided_slice %62 {offsets = [16, 0], sizes = [32, 256], strides = [1, 1]} : vector<48x256xf32> to vector<32x256xf32>
    %65 = tpu.concatenate %63, %64 in 1 : vector<32x256xf32>, vector<32x256xf32> -> vector<32x512xf32>
    %c6 = arith.constant 6 : index
    %c0_33 = arith.constant 0 : index
    %c0_34 = arith.constant 0 : index
    %66 = vector.load %arg4[%c6, %c0_33, %c0_34] : memref<7x48x32xf32, #tpu.memory_space<vmem>>, vector<1x48x32xf32>
    %67 = vector.shape_cast %66 : vector<1x48x32xf32> to vector<48x32xf32>
    %cst_35 = arith.constant dense<0.000000e+00> : vector<48x512xf32>
    %68 = tpu.matmul %67, %65, %cst_35 {dimension_numbers = #tpu.dot_dimension_numbers<[1], [0], [0], [1], [0, 0, 1, 1], [], []>} : vector<48x32xf32>, vector<32x512xf32>, vector<48x512xf32> -> vector<48x512xf32>
    %cst_36 = arith.constant 0.000000e+00 : f32
    %69 = vector.broadcast %cst_36 : f32 to vector<48x512xf32>
    %70 = arith.maximumf %68, %69 : vector<48x512xf32>
    %71 = vector.extract_strided_slice %70 {offsets = [0, 0], sizes = [32, 512], strides = [1, 1]} : vector<48x512xf32> to vector<32x512xf32>
    %72 = vector.extract_strided_slice %70 {offsets = [16, 0], sizes = [32, 512], strides = [1, 1]} : vector<48x512xf32> to vector<32x512xf32>
    %73 = tpu.concatenate %71, %72 in 1 : vector<32x512xf32>, vector<32x512xf32> -> vector<32x1024xf32>
    %c0_37 = arith.constant 0 : index
    %c0_38 = arith.constant 0 : index
    %74 = vector.load %arg5[%c0_37, %c0_38] : memref<8x32xf32, #tpu.memory_space<vmem>>, vector<8x32xf32>
    %cst_39 = arith.constant dense<0.000000e+00> : vector<8x1024xf32>
    %75 = tpu.matmul %74, %73, %cst_39 {dimension_numbers = #tpu.dot_dimension_numbers<[1], [0], [0], [1], [0, 0, 1, 1], [], []>} : vector<8x32xf32>, vector<32x1024xf32>, vector<8x1024xf32> -> vector<8x1024xf32>
    %76 = vector.extract_strided_slice %75 {offsets = [0, 0], sizes = [4, 1024], strides = [1, 1]} : vector<8x1024xf32> to vector<4x1024xf32>
    %77 = vector.extract_strided_slice %75 {offsets = [4, 0], sizes = [4, 1024], strides = [1, 1]} : vector<8x1024xf32> to vector<4x1024xf32>
    %78 = tpu.concatenate %76, %77 in 1 : vector<4x1024xf32>, vector<4x1024xf32> -> vector<4x2048xf32>
    %c0_40 = arith.constant 0 : index
    %c0_41 = arith.constant 0 : index
    %c0_42 = arith.constant 0 : index
    %79 = vector.load %arg6[%c0_40, %c0_41, %c0_42] : memref<1x4x2048xf32, #tpu.memory_space<vmem>>, vector<1x4x2048xf32>
    %80 = vector.shape_cast %79 : vector<1x4x2048xf32> to vector<4x2048xf32>
    %81 = vector.shape_cast %78 : vector<4x2048xf32> to vector<1x4x2048xf32>
    tpu.vector_store %arg6[%c0_40, %c0_41, %c0_42], %81 {strides = array<i32>} : memref<1x4x2048xf32, #tpu.memory_space<vmem>>, vector<1x4x2048xf32>,
    return
  }
  func.func @transform_0(%arg0: i32) -> (i32, i32, i32) {
    %c0_i32 = arith.constant 0 : i32
    %c0_i32_0 = arith.constant 0 : i32
    %c0_i32_1 = arith.constant 0 : i32
    return %arg0, %c0_i32, %c0_i32_0 : i32, i32, i32
  }
  func.func @transform_1(%arg0: i32) -> (i32, i32) {
    %c0_i32 = arith.constant 0 : i32
    %c0_i32_0 = arith.constant 0 : i32
    %c0_i32_1 = arith.constant 0 : i32
    return %c0_i32, %c0_i32_0 : i32, i32
  }
  func.func @transform_2(%arg0: i32) -> (i32, i32) {
    %c0_i32 = arith.constant 0 : i32
    %c0_i32_0 = arith.constant 0 : i32
    %c0_i32_1 = arith.constant 0 : i32
    return %c0_i32, %c0_i32_0 : i32, i32
  }
  func.func @transform_3(%arg0: i32) -> (i32, i32, i32) {
    %c0_i32 = arith.constant 0 : i32
    %c0_i32_0 = arith.constant 0 : i32
    %c0_i32_1 = arith.constant 0 : i32
    %c0_i32_2 = arith.constant 0 : i32
    return %c0_i32, %c0_i32_0, %c0_i32_1 : i32, i32, i32
  }
  func.func @transform_4(%arg0: i32) -> (i32, i32) {
    %c0_i32 = arith.constant 0 : i32
    %c0_i32_0 = arith.constant 0 : i32
    %c0_i32_1 = arith.constant 0 : i32
    return %c0_i32, %c0_i32_0 : i32, i32
  }
  func.func @transform_5(%arg0: i32) -> (i32, i32, i32) {
    %c0_i32 = arith.constant 0 : i32
    %c0_i32_0 = arith.constant 0 : i32
    %c0_i32_1 = arith.constant 0 : i32
    return %arg0, %c0_i32, %c0_i32_0 : i32, i32, i32
  }
}

</mosaic_0001>

<llo_original>
// kernel: tpu_custom_call.1
$region0: #{tpu_custom_call.1}
  #allocation0 [shape = 'u32[]', space=smem, size = 0x4, offset = 0x4, fixed_abs, tag = 'smem constant byte address 0x4 - core index']
  #allocation1 [shape = 'u32[144,128]{1,0:T(1,128)}', space=vmem, size = 0x12000, scoped, tag = 'internal scratch']
  %s0 = inlined_call_operand.vmem [shape: f32[2,32,8], index: 0, kind: input, shape index: {}]
  %s1 = inlined_call_operand.vmem [shape: f32[16,32], index: 1, kind: input, shape index: {}]
  %s2 = inlined_call_operand.vmem [shape: f32[16,1], index: 2, kind: input, shape index: {}]
  %s3 = inlined_call_operand.vmem [shape: f32[7,48,32], index: 3, kind: input, shape index: {}]
  %s4 = inlined_call_operand.vmem [shape: f32[8,32], index: 4, kind: input, shape index: {}]
  %s5 = inlined_call_operand.hbm [shape: f32[2,4,2048], index: 5, kind: output, shape index: {}]
  %s6 = sld [smem:[#allocation0]]
  $region53: #{tpu_custom_call.1} parent=0
    _
  %s8 = ssub.s32 1, %s6
  %s9 = scalar_select 0, %s8, %s6
  $region1: #{tpu_custom_call.1} parent=0
    #allocation2 [shape = 'u8[65536]{0}', space=vmem, size = 0x10000, scoped, tag = 'output window, operand 0']
    #allocation3 [shape = 's32[2]{0}', space=sflag, size = 0x8, scoped, tag = 'scoped memory for tpu_custom_call.1']
    %10 = vsyncpa [#allocation3], 0
    %s11 = scalar_lea.sflag [#allocation3], 1
    %12 = vsyncpa %s11, 0
    loop: start=0, step=1, limit=4
    $region2: #{tpu_custom_call.1} parent=1 // loop_pre_header
      _
    $region3: #{tpu_custom_call.1} parent=1 // loop_header
      %s14 = sphi 0, %s18
      %p15 = scmp.ge.s32.totalorder %s14, 4
      %s24 = sphi 0, %s26
      %s27 = sphi 0, %s24
      %s28 = sphi 0, %s27
      %s44 = sphi 0, %s28
      %s48 = sphi 0, %s48
      %s50 = sphi 0, %s48
      %s51 = sphi 0, %s50
      %s65 = sphi 0, %s51
      %s69 = sphi 0, %s69
      %s71 = sphi 0, %s69
      %s72 = sphi 0, %s71
      %s86 = sphi 0, %s72
      %s90 = sphi 0, %s90
      %s92 = sphi 0, %s90
      %s93 = sphi 0, %s92
      %s107 = sphi 0, %s93
      %s111 = sphi 0, %s111
      %s113 = sphi 0, %s111
      %s114 = sphi 0, %s113
      %s128 = sphi 0, %s114
      %s134 = sphi 0, %s136
      %s137 = sphi 0, %s134
      %s138 = sphi 0, %s137
      %s154 = sphi 0, %s138
    $region4: #{tpu_custom_call.1} parent=1 // loop_header_branch
      %17 = sbr.rel (%p15) target = $region8
    $region5: #{tpu_custom_call.1} parent=1 // loop_body
      %s19 = ssub.s32 %s14, 1
      %s20 = ssub.s32 %s14, 2
      %s21 = sadd.s32 %s14, 1
      %s22 = ssub.s32 %s14, %s21
      %p23 = scmp.eq.s32.totalorder %s22, 0
      %s25 = sadd.s32 %s24, 1
      %s26 = scalar_select %p23, %s24, %s25
      %p29 = pneg %p23
      %p30 = scmp.eq.s32.totalorder %s14, 1
      %p31 = por %p29, %p30
      %p32 = scmp.ne.s32.totalorder %s24, %s27
      %p33 = scmp.eq.s32.totalorder %s14, 0
      %p34 = por %p32, %p33
      %p35 = scmp.ne.s32.totalorder %s24, %s27
      %p36 = scmp.eq.s32.totalorder %s19, 1
      %p37 = por %p35, %p36
      %p38 = scmp.ne.s32.totalorder %s27, %s28
      %p39 = scmp.eq.s32.totalorder %s19, 0
      %p40 = por %p38, %p39
      %p41 = scmp.ne.s32.totalorder %s27, %s28
      %p42 = scmp.eq.s32.totalorder %s20, 1
      %p43 = por %p41, %p42
      %p45 = scmp.ne.s32.totalorder %s28, %s44
      %p46 = scmp.eq.s32.totalorder %s20, 0
      %p47 = por %p45, %p46
      %s49 = sadd.s32 %s48, 1
      %p52 = scmp.eq.s32.totalorder %s14, 1
      %p53 = scmp.ne.s32.totalorder %s48, %s50
      %p54 = scmp.eq.s32.totalorder %s14, 0
      %p55 = por %p53, %p54
      %p56 = scmp.ne.s32.totalorder %s48, %s50
      %p57 = scmp.eq.s32.totalorder %s19, 1
      %p58 = por %p56, %p57
      %p59 = scmp.ne.s32.totalorder %s50, %s51
      %p60 = scmp.eq.s32.totalorder %s19, 0
      %p61 = por %p59, %p60
      %p62 = scmp.ne.s32.totalorder %s50, %s51
      %p63 = scmp.eq.s32.totalorder %s20, 1
      %p64 = por %p62, %p63
      %p66 = scmp.ne.s32.totalorder %s51, %s65
      %p67 = scmp.eq.s32.totalorder %s20, 0
      %p68 = por %p66, %p67
      %s70 = sadd.s32 %s69, 1
      %p73 = scmp.eq.s32.totalorder %s14, 1
      %p74 = scmp.ne.s32.totalorder %s69, %s71
      %p75 = scmp.eq.s32.totalorder %s14, 0
      %p76 = por %p74, %p75
      %p77 = scmp.ne.s32.totalorder %s69, %s71
      %p78 = scmp.eq.s32.totalorder %s19, 1
      %p79 = por %p77, %p78
      %p80 = scmp.ne.s32.totalorder %s71, %s72
      %p81 = scmp.eq.s32.totalorder %s19, 0
      %p82 = por %p80, %p81
      %p83 = scmp.ne.s32.totalorder %s71, %s72
      %p84 = scmp.eq.s32.totalorder %s20, 1
      %p85 = por %p83, %p84
      %p87 = scmp.ne.s32.totalorder %s72, %s86
      %p88 = scmp.eq.s32.totalorder %s20, 0
      %p89 = por %p87, %p88
      %s91 = sadd.s32 %s90, 1
      %p94 = scmp.eq.s32.totalorder %s14, 1
      %p95 = scmp.ne.s32.totalorder %s90, %s92
      %p96 = scmp.eq.s32.totalorder %s14, 0
      %p97 = por %p95, %p96
      %p98 = scmp.ne.s32.totalorder %s90, %s92
      %p99 = scmp.eq.s32.totalorder %s19, 1
      %p100 = por %p98, %p99
      %p101 = scmp.ne.s32.totalorder %s92, %s93
      %p102 = scmp.eq.s32.totalorder %s19, 0
      %p103 = por %p101, %p102
      %p104 = scmp.ne.s32.totalorder %s92, %s93
      %p105 = scmp.eq.s32.totalorder %s20, 1
      %p106 = por %p104, %p105
      %p108 = scmp.ne.s32.totalorder %s93, %s107
      %p109 = scmp.eq.s32.totalorder %s20, 0
      %p110 = por %p108, %p109
      %s112 = sadd.s32 %s111, 1
      %p115 = scmp.eq.s32.totalorder %s14, 1
      %p116 = scmp.ne.s32.totalorder %s111, %s113
      %p117 = scmp.eq.s32.totalorder %s14, 0
      %p118 = por %p116, %p117
      %p119 = scmp.ne.s32.totalorder %s111, %s113
      %p120 = scmp.eq.s32.totalorder %s19, 1
      %p121 = por %p119, %p120
      %p122 = scmp.ne.s32.totalorder %s113, %s114
      %p123 = scmp.eq.s32.totalorder %s19, 0
      %p124 = por %p122, %p123
      %p125 = scmp.ne.s32.totalorder %s113, %s114
      %p126 = scmp.eq.s32.totalorder %s20, 1
      %p127 = por %p125, %p126
      %p129 = scmp.ne.s32.totalorder %s114, %s128
      %p130 = scmp.eq.s32.totalorder %s20, 0
      %p131 = por %p129, %p130
      %s132 = ssub.s32 %s14, %s21
      %p133 = scmp.eq.s32.totalorder %s132, 0
      %s135 = sadd.s32 %s134, 1
      %s136 = scalar_select %p133, %s134, %s135
      %p139 = pneg %p133
      %p140 = scmp.eq.s32.totalorder %s14, 1
      %p141 = por %p139, %p140
      %p142 = scmp.ne.s32.totalorder %s134, %s137
      %p143 = scmp.eq.s32.totalorder %s14, 0
      %p144 = por %p142, %p143
      %p145 = scmp.ne.s32.totalorder %s134, %s137
      %p146 = scmp.eq.s32.totalorder %s19, 1
      %p147 = por %p145, %p146
      %p148 = scmp.ne.s32.totalorder %s137, %s138
      %p149 = scmp.eq.s32.totalorder %s19, 0
      %p150 = por %p148, %p149
      %p151 = scmp.ne.s32.totalorder %s137, %s138
      %p152 = scmp.eq.s32.totalorder %s20, 1
      %p153 = por %p151, %p152
      %p155 = scmp.ne.s32.totalorder %s138, %s154
      %p156 = scmp.eq.s32.totalorder %s20, 0
      %p157 = por %p155, %p156
      %p158 = scmp.le.s32.totalorder 1, %s14
      %p159 = scmp.lt.s32.totalorder %s14, 3
      %p160 = pnand %p158, %p159
      %p161 = pneg %p160
      // Predicated region
      $region9: #{tpu_custom_call.1} parent=5 // pred_check
        _
      $region10: #{tpu_custom_call.1} parent=5 // pred_check_branch
        %163 = sbr.rel (%p160) target = $region12
      $region11: #{tpu_custom_call.1} parent=5 // pred_region
        %s164 = ssub.s32 %s14, 1
        // Predicated region
        $region13: #{tpu_custom_call.1} parent=11 // pred_check
          %p165 = pneg %p61
        $region14: #{tpu_custom_call.1} parent=11 // pred_check_branch
          %167 = sbr.rel (%p165) target = $region16
        $region15: #{tpu_custom_call.1} parent=11 // pred_region
          _
        $region16: #{tpu_custom_call.1} parent=11 // pred_fallthru
          _
        // Predicated region
        $region17: #{tpu_custom_call.1} parent=11 // pred_check
          %p168 = pneg %p82
        $region18: #{tpu_custom_call.1} parent=11 // pred_check_branch
          %170 = sbr.rel (%p168) target = $region20
        $region19: #{tpu_custom_call.1} parent=11 // pred_region
          _
        $region20: #{tpu_custom_call.1} parent=11 // pred_fallthru
          _
        // Predicated region
        $region21: #{tpu_custom_call.1} parent=11 // pred_check
          %p171 = pneg %p103
        $region22: #{tpu_custom_call.1} parent=11 // pred_check_branch
          %173 = sbr.rel (%p171) target = $region24
        $region23: #{tpu_custom_call.1} parent=11 // pred_region
          _
        $region24: #{tpu_custom_call.1} parent=11 // pred_fallthru
          _
        // Predicated region
        $region25: #{tpu_custom_call.1} parent=11 // pred_check
          %p174 = pneg %p124
        $region26: #{tpu_custom_call.1} parent=11 // pred_check_branch
          %176 = sbr.rel (%p174) target = $region28
        $region27: #{tpu_custom_call.1} parent=11 // pred_region
          _
        $region28: #{tpu_custom_call.1} parent=11 // pred_fallthru
          _
      $region12: #{tpu_custom_call.1} parent=5 // pred_fallthru
        _
      %p177 = scmp.lt.s32.totalorder %s14, 2
      // Predicated region
      $region29: #{tpu_custom_call.1} parent=5 // pred_check
        %p178 = pneg %p177
      $region30: #{tpu_custom_call.1} parent=5 // pred_check_branch
        %180 = sbr.rel (%p178) target = $region32
      $region31: #{tpu_custom_call.1} parent=5 // pred_region
        // Predicated region
        $region33: #{tpu_custom_call.1} parent=31 // pred_check
          %p181 = pneg %p34
        $region34: #{tpu_custom_call.1} parent=31 // pred_check_branch
          %183 = sbr.rel (%p181) target = $region36
        $region35: #{tpu_custom_call.1} parent=31 // pred_region
          %p184 = scmp.lt.s32.totalorder %s14, 1
          %s185 = scalar_select %p184, %s14, 1
          %s186 = smul.addr %s185, 4
          %s187 = smul.addr %s186, 8
          %s188 = scalar_lea.vmem %s0, %s187
        $region36: #{tpu_custom_call.1} parent=31 // pred_fallthru
          _
      $region32: #{tpu_custom_call.1} parent=5 // pred_fallthru
        _
      %p189 = scmp.le.s32.totalorder 1, %s14
      %p190 = scmp.lt.s32.totalorder %s14, 3
      %p191 = pnand %p189, %p190
      %p192 = pneg %p191
      // Predicated region
      $region37: #{tpu_custom_call.1} parent=5 // pred_check
        _
      $region38: #{tpu_custom_call.1} parent=5 // pred_check_branch
        %194 = sbr.rel (%p191) target = $region40
      $region39: #{tpu_custom_call.1} parent=5 // pred_region
        %s195 = ssub.s32 %s14, 1
        %p196 = scmp.lt.s32.totalorder %s19, 1
        %s197 = scalar_select %p196, %s19, 1
        %s198 = smul.addr %s197, 4
        %s199 = smul.addr %s198, 8
        %s200 = scalar_lea.vmem %s0, %s199
        %p201 = pneg %p40
        %p202 = pneg %p37
        %p203 = pneg %p61
        %p204 = pneg %p58
        %p205 = pneg %p82
        %p206 = pneg %p79
        %p207 = pneg %p103
        %p208 = pneg %p100
        %p209 = pneg %p124
        %p210 = pneg %p121
        %p211 = pneg %p150
        %p212 = pneg %p147
        %s213 = sand.u32 %s137, 1
        %s214 = scalar_lea.sflag [#allocation3], %s213
        %s215 = sand.u32 %s137, 1
        %s216 = smul.addr %s215, 64
        %s217 = scalar_lea.vmem [#allocation2], %s216
        %p218 = scmp.lt.s32.totalorder %s19, 1
        %s219 = scalar_select %p218, %s19, 1
        %s220 = smul.addr %s219, 4
        %s221 = smul.addr %s220, 8
        %s222 = scalar_lea.vmem %s0, %s221
        %v223 = vld [vmem:[%s1] sm:$0xff]
        %v224 = vld [vmem:[%s1 + $0x8] sm:$0xff]
        %v225 = vld [vmem:[%s222] sm:$0xff]
        %v226 = vld [vmem:[%s222 + $0x8] sm:$0xff]
        %v227 = vld [vmem:[%s222 + $0x10] sm:$0xff]
        %v228 = vld [vmem:[%s222 + $0x18] sm:$0xff]
        %v229 = vld [vmem:[%s2] sm:$0xff]
        %v230 = vld [vmem:[%s2 + $0x8] sm:$0xff]
        %232 = vset.pattern.permute.xlu0 0
        %233 = vperm.xlu0 %232, %v229
        %v234 = vpop.permute.xlu0 %233
        %237 = vset.pattern.permute.xlu0 0
        %238 = vperm.xlu0 %237, %v230
        %v239 = vpop.permute.xlu0 %238
        %vm241 = vcmask 261120
        %v243 = vsel %vm241, %v223, 0
        %v246 = vsel %vm241, %v224, 0
        %248 = vmatprep.subr.mxu0 0.0
        %249 = vmatpush1.msra.mxu0 %v225
        %250 = vmatprep.subr.mxu0 0.0
        %251 = vmatpush1.msra.mxu0 %v226
        %252 = vmatprep.subr.mxu0 0.0
        %253 = vmatpush1.msra.mxu0 %v227
        %254 = vmatprep.subr.mxu0 0.0
        %255 = vmatpush1.msra.mxu0 %v228
        %256 = vmatprep.subr.mxu0 0.0
        %257 = vmatpush1.msra.mxu0 0.0
        %258 = vmatprep.subr.mxu0 0.0
        %259 = vmatpush1.msra.mxu0 0.0
        %260 = vmatprep.subr.mxu0 0.0
        %261 = vmatpush1.msra.mxu0 0.0
        %262 = vmatprep.subr.mxu0 0.0
        %263 = vmatpush1.msra.mxu0 0.0
        %264 = vmatprep.subr.mxu0 0.0
        %265 = vmatpush1.msra.mxu0 0.0
        %266 = vmatprep.subr.mxu0 0.0
        %267 = vmatpush1.msra.mxu0 0.0
        %268 = vmatprep.subr.mxu0 0.0
        %269 = vmatpush1.msra.mxu0 0.0
        %270 = vmatprep.subr.mxu0 0.0
        %271 = vmatpush1.msra.mxu0 0.0
        %272 = vmatprep.subr.mxu0 0.0
        %273 = vmatpush1.msra.mxu0 0.0
        %274 = vmatprep.subr.mxu0 0.0
        %275 = vmatpush1.msra.mxu0 0.0
        %276 = vmatprep.subr.mxu0 0.0
        %277 = vmatpush1.msra.mxu0 0.0
        %278 = vmatprep.subr.mxu0 0.0
        %279 = vmatpush1.msra.mxu0 0.0
        %280 = vmatprep.subr.mxu0 0.0
        %281 = vmatpush1.msra.mxu0 0.0
        %282 = vmatprep.subr.mxu0 0.0
        %283 = vmatpush1.msra.mxu0 0.0
        %284 = vmatprep.subr.mxu0 0.0
        %285 = vmatpush1.msra.mxu0 0.0
        %286 = vmatprep.subr.mxu0 0.0
        %287 = vmatpush1.msra.mxu0 0.0
        %288 = vmatprep.subr.mxu0 0.0
        %289 = vmatpush1.msra.mxu0 0.0
        %290 = vmatprep.subr.mxu0 0.0
        %291 = vmatpush1.msra.mxu0 0.0
        %292 = vmatprep.subr.mxu0 0.0
        %293 = vmatpush1.msra.mxu0 0.0
        %294 = vmatprep.subr.mxu0 0.0
        %295 = vmatpush1.msra.mxu0 0.0
        %296 = vmatprep.subr.mxu0 0.0
        %297 = vmatpush1.msra.mxu0 0.0
        %298 = vmatprep.subr.mxu0 0.0
        %299 = vmatpush1.msra.mxu0 0.0
        %300 = vmatprep.subr.mxu0 0.0
        %301 = vmatpush1.msra.mxu0 0.0
        %302 = vmatprep.subr.mxu0 0.0
        %303 = vmatpush1.msra.mxu0 0.0
        %304 = vmatprep.subr.mxu0 0.0
        %305 = vmatpush1.msra.mxu0 0.0
        %306 = vmatprep.subr.mxu0 0.0
        %307 = vmatpush1.msra.mxu0 0.0
        %308 = vmatprep.subr.mxu0 0.0
        %309 = vmatpush1.msra.mxu0 0.0
        %310 = vmatprep.subr.mxu0 0.0
        %311 = vmatpush1.msra.mxu0 0.0
        %312 = vmatprep.mubr.f32.mxu0 0.0
        %313 = vmatmul.mubr.f32.gmra.mrb[0].mxu0 %v243
        %v314 = vpop.f32.mrb[0].mxu0
        %v315 = vadd.f32 %v234, %v314
        %v316 = vpop.f32.mrb[0].mxu0
        %317 = vmatprep.mubr.f32.mxu0 0.0
        %318 = vmatmul.mubr.f32.gmra.mrb[0].mxu0 %v246
        %v319 = vpop.f32.mrb[0].mxu0
        %v320 = vadd.f32 %v239, %v319
        %v321 = vpop.f32.mrb[0].mxu0
        %322 = vdwg.mxu0
        %v323 = vmax.f32 %v315, 0.0
        %v324 = vmax.f32 %v320, 0.0
        %v325 = vlaneseq
        %v326 = vshrl.u32 %v325, 7
        %v327 = vlaneseq
        %v328 = vand.u32 %v327, 127
        %v329 = vadd.s32 %v328, 1
        %vm330 = vcmp.eq.s32.totalorder %v326, %v329
        %v331 = vsel %vm330, 1, 0
        %v332 = vcvt.s32.f32 %v331
        %vm333 = vcmask 64512
        %v335 = vsel %vm333, %v323, 0
        %v338 = vsel %vm333, %v324, 0
        %340 = vmatprep.subr.mxu0 0.0
        %341 = vmatpush1.msra.mxu0 %v332
        %342 = vmatprep.subr.mxu0 0.0
        %343 = vmatpush1.msra.mxu0 0.0
        %344 = vmatprep.subr.mxu0 0.0
        %345 = vmatpush1.msra.mxu0 0.0
        %346 = vmatprep.subr.mxu0 0.0
        %347 = vmatpush1.msra.mxu0 0.0
        %348 = vmatprep.subr.mxu0 0.0
        %349 = vmatpush1.msra.mxu0 0.0
        %350 = vmatprep.subr.mxu0 0.0
        %351 = vmatpush1.msra.mxu0 0.0
        %352 = vmatprep.subr.mxu0 0.0
        %353 = vmatpush1.msra.mxu0 0.0
        %354 = vmatprep.subr.mxu0 0.0
        %355 = vmatpush1.msra.mxu0 0.0
        %356 = vmatprep.subr.mxu0 0.0
        %357 = vmatpush1.msra.mxu0 0.0
        %358 = vmatprep.subr.mxu0 0.0
        %359 = vmatpush1.msra.mxu0 0.0
        %360 = vmatprep.subr.mxu0 0.0
        %361 = vmatpush1.msra.mxu0 0.0
        %362 = vmatprep.subr.mxu0 0.0
        %363 = vmatpush1.msra.mxu0 0.0
        %364 = vmatprep.subr.mxu0 0.0
        %365 = vmatpush1.msra.mxu0 0.0
        %366 = vmatprep.subr.mxu0 0.0
        %367 = vmatpush1.msra.mxu0 0.0
        %368 = vmatprep.subr.mxu0 0.0
        %369 = vmatpush1.msra.mxu0 0.0
        %370 = vmatprep.subr.mxu0 0.0
        %371 = vmatpush1.msra.mxu0 0.0
        %372 = vmatprep.subr.mxu0 0.0
        %373 = vmatpush1.msra.mxu0 0.0
        %374 = vmatprep.subr.mxu0 0.0
        %375 = vmatpush1.msra.mxu0 0.0
        %376 = vmatprep.subr.mxu0 0.0
        %377 = vmatpush1.msra.mxu0 0.0
        %378 = vmatprep.subr.mxu0 0.0
        %379 = vmatpush1.msra.mxu0 0.0
        %380 = vmatprep.subr.mxu0 0.0
        %381 = vmatpush1.msra.mxu0 0.0
        %382 = vmatprep.subr.mxu0 0.0
        %383 = vmatpush1.msra.mxu0 0.0
        %384 = vmatprep.subr.mxu0 0.0
        %385 = vmatpush1.msra.mxu0 0.0
        %386 = vmatprep.subr.mxu0 0.0
        %387 = vmatpush1.msra.mxu0 0.0
        %388 = vmatprep.subr.mxu0 0.0
        %389 = vmatpush1.msra.mxu0 0.0
        %390 = vmatprep.subr.mxu0 0.0
        %391 = vmatpush1.msra.mxu0 0.0
        %392 = vmatprep.subr.mxu0 0.0
        %393 = vmatpush1.msra.mxu0 0.0
        %394 = vmatprep.subr.mxu0 0.0
        %395 = vmatpush1.msra.mxu0 0.0
        %396 = vmatprep.subr.mxu0 0.0
        %397 = vmatpush1.msra.mxu0 0.0
        %398 = vmatprep.subr.mxu0 0.0
        %399 = vmatpush1.msra.mxu0 0.0
        %400 = vmatprep.subr.mxu0 0.0
        %401 = vmatpush1.msra.mxu0 0.0
        %402 = vmatprep.subr.mxu0 0.0
        %403 = vmatpush1.msra.mxu0 0.0
        %404 = vmatprep.mubr.f32.mxu0 0.0
        %405 = vmatmul.mubr.f32.gmra.mrb[0].mxu0 %v335
        %v406 = vpop.f32.mrb[0].mxu0
        %v407 = vadd.f32 0.0, %v406
        %v408 = vpop.f32.mrb[0].mxu0
        %409 = vmatprep.mubr.f32.mxu0 0.0
        %410 = vmatmul.mubr.f32.gmra.mrb[0].mxu0 %v338
        %v411 = vpop.f32.mrb[0].mxu0
        %v412 = vadd.f32 0.0, %v411
        %v413 = vpop.f32.mrb[0].mxu0
        %414 = vdwg.mxu0
        %v415 = vld [vmem:[%s3] sm:$0xff]
        %v416 = vld [vmem:[%s3 + $0x8] sm:$0xff]
        %v417 = vld [vmem:[%s3 + $0x10] sm:$0xff]
        %v418 = vld [vmem:[%s3 + $0x18] sm:$0xff]
        %v419 = vld [vmem:[%s3 + $0x20] sm:$0xff]
        %v420 = vld [vmem:[%s3 + $0x28] sm:$0xff]
        %v422 = vsel %vm241, %v415, 0
        %v425 = vsel %vm241, %v416, 0
        %v428 = vsel %vm241, %v417, 0
        %v431 = vsel %vm241, %v418, 0
        %v434 = vsel %vm241, %v419, 0
        %v437 = vsel %vm241, %v420, 0
        %439 = vmatprep.subr.mxu0 0.0
        %440 = vmatpush1.msra.mxu0 %v323
        %441 = vmatprep.subr.mxu0 0.0
        %442 = vmatpush1.msra.mxu0 %v324
        %443 = vmatprep.subr.mxu0 0.0
        %444 = vmatpush1.msra.mxu0 %v407
        %445 = vmatprep.subr.mxu0 0.0
        %446 = vmatpush1.msra.mxu0 %v412
        %447 = vmatprep.subr.mxu0 0.0
        %448 = vmatpush1.msra.mxu0 0.0
        %449 = vmatprep.subr.mxu0 0.0
        %450 = vmatpush1.msra.mxu0 0.0
        %451 = vmatprep.subr.mxu0 0.0
        %452 = vmatpush1.msra.mxu0 0.0
        %453 = vmatprep.subr.mxu0 0.0
        %454 = vmatpush1.msra.mxu0 0.0
        %455 = vmatprep.subr.mxu0 0.0
        %456 = vmatpush1.msra.mxu0 0.0
        %457 = vmatprep.subr.mxu0 0.0
        %458 = vmatpush1.msra.mxu0 0.0
        %459 = vmatprep.subr.mxu0 0.0
        %460 = vmatpush1.msra.mxu0 0.0
        %461 = vmatprep.subr.mxu0 0.0
        %462 = vmatpush1.msra.mxu0 0.0
        %463 = vmatprep.subr.mxu0 0.0
        %464 = vmatpush1.msra.mxu0 0.0
        %465 = vmatprep.subr.mxu0 0.0
        %466 = vmatpush1.msra.mxu0 0.0
        %467 = vmatprep.subr.mxu0 0.0
        %468 = vmatpush1.msra.mxu0 0.0
        %469 = vmatprep.subr.mxu0 0.0
        %470 = vmatpush1.msra.mxu0 0.0
        %471 = vmatprep.subr.mxu0 0.0
        %472 = vmatpush1.msra.mxu0 0.0
        %473 = vmatprep.subr.mxu0 0.0
        %474 = vmatpush1.msra.mxu0 0.0
        %475 = vmatprep.subr.mxu0 0.0
        %476 = vmatpush1.msra.mxu0 0.0
        %477 = vmatprep.subr.mxu0 0.0
        %478 = vmatpush1.msra.mxu0 0.0
        %479 = vmatprep.subr.mxu0 0.0
        %480 = vmatpush1.msra.mxu0 0.0
        %481 = vmatprep.subr.mxu0 0.0
        %482 = vmatpush1.msra.mxu0 0.0
        %483 = vmatprep.subr.mxu0 0.0
        %484 = vmatpush1.msra.mxu0 0.0
        %485 = vmatprep.subr.mxu0 0.0
        %486 = vmatpush1.msra.mxu0 0.0
        %487 = vmatprep.subr.mxu0 0.0
        %488 = vmatpush1.msra.mxu0 0.0
        %489 = vmatprep.subr.mxu0 0.0
        %490 = vmatpush1.msra.mxu0 0.0
        %491 = vmatprep.subr.mxu0 0.0
        %492 = vmatpush1.msra.mxu0 0.0
        %493 = vmatprep.subr.mxu0 0.0
        %494 = vmatpush1.msra.mxu0 0.0
        %495 = vmatprep.subr.mxu0 0.0
        %496 = vmatpush1.msra.mxu0 0.0
        %497 = vmatprep.subr.mxu0 0.0
        %498 = vmatpush1.msra.mxu0 0.0
        %499 = vmatprep.subr.mxu0 0.0
        %500 = vmatpush1.msra.mxu0 0.0
        %501 = vmatprep.subr.mxu0 0.0
        %502 = vmatpush1.msra.mxu0 0.0
        %503 = vmatprep.mubr.f32.mxu0 0.0
        %504 = vmatmul.mubr.f32.gmra.mrb[0].mxu0 %v422
        %v505 = vpop.f32.mrb[0].mxu0
        %v506 = vadd.f32 0.0, %v505
        %v507 = vpop.f32.mrb[0].mxu0
        %508 = vmatprep.mubr.f32.mxu0 0.0
        %509 = vmatmul.mubr.f32.gmra.mrb[0].mxu0 %v425
        %v510 = vpop.f32.mrb[0].mxu0
        %v511 = vadd.f32 0.0, %v510
        %v512 = vpop.f32.mrb[0].mxu0
        %513 = vmatprep.mubr.f32.mxu0 0.0
        %514 = vmatmul.mubr.f32.gmra.mrb[0].mxu0 %v428
        %v515 = vpop.f32.mrb[0].mxu0
        %v516 = vadd.f32 0.0, %v515
        %v517 = vpop.f32.mrb[0].mxu0
        %518 = vmatprep.mubr.f32.mxu0 0.0
        %519 = vmatmul.mubr.f32.gmra.mrb[0].mxu0 %v431
        %v520 = vpop.f32.mrb[0].mxu0
        %v521 = vadd.f32 0.0, %v520
        %v522 = vpop.f32.mrb[0].mxu0
        %523 = vmatprep.mubr.f32.mxu0 0.0
        %524 = vmatmul.mubr.f32.gmra.mrb[0].mxu0 %v434
        %v525 = vpop.f32.mrb[0].mxu0
        %v526 = vadd.f32 0.0, %v525
        %v527 = vpop.f32.mrb[0].mxu0
        %528 = vmatprep.mubr.f32.mxu0 0.0
        %529 = vmatmul.mubr.f32.gmra.mrb[0].mxu0 %v437
        %v530 = vpop.f32.mrb[0].mxu0
        %v531 = vadd.f32 0.0, %v530
        %v532 = vpop.f32.mrb[0].mxu0
        %533 = vdwg.mxu0
        %v534 = vmax.f32 %v506, 0.0
        %v535 = vmax.f32 %v511, 0.0
        %v536 = vmax.f32 %v516, 0.0
        %v537 = vmax.f32 %v521, 0.0
        %v538 = vmax.f32 %v526, 0.0
        %v539 = vmax.f32 %v531, 0.0
        %544 = vrot.lane.b32.xlu0 %v536, 8
        %v545 = vpop.permute.xlu0 %544
        %546 = vrot.lane.b32.xlu0 %v537, 8
        %v547 = vpop.permute.xlu0 %546
        %548 = vrot.lane.b32.xlu0 %v538, 8
        %v549 = vpop.permute.xlu0 %548
        %550 = vrot.lane.b32.xlu0 %v539, 8
        %v551 = vpop.permute.xlu0 %550
        %v556 = vsel %vm333, %v534, %v545
        %v557 = vsel %vm333, %v535, %v547
        %v558 = vsel %vm333, %v536, %v549
        %v559 = vsel %vm333, %v537, %v551
        %s560 = scalar_lea.vmem %s3, 48
        %v561 = vld [vmem:[%s560] sm:$0xff]
        %v562 = vld [vmem:[%s560 + $0x8] sm:$0xff]
        %v563 = vld [vmem:[%s560 + $0x10] sm:$0xff]
        %v564 = vld [vmem:[%s560 + $0x18] sm:$0xff]
        %v565 = vld [vmem:[%s560 + $0x20] sm:$0xff]
        %v566 = vld [vmem:[%s560 + $0x28] sm:$0xff]
        %v568 = vsel %vm241, %v561, 0
        %v571 = vsel %vm241, %v562, 0
        %v574 = vsel %vm241, %v563, 0
        %v577 = vsel %vm241, %v564, 0
        %v580 = vsel %vm241, %v565, 0
        %v583 = vsel %vm241, %v566, 0
        %585 = vmatprep.subr.mxu0 0.0
        %586 = vmatpush1.msra.mxu0 %v556
        %587 = vmatprep.subr.mxu0 0.0
        %588 = vmatpush1.msra.mxu0 %v557
        %589 = vmatprep.subr.mxu0 0.0
        %590 = vmatpush1.msra.mxu0 %v558
        %591 = vmatprep.subr.mxu0 0.0
        %592 = vmatpush1.msra.mxu0 %v559
        %593 = vmatprep.subr.mxu0 0.0
        %594 = vmatpush1.msra.mxu0 0.0
        %595 = vmatprep.subr.mxu0 0.0
        %596 = vmatpush1.msra.mxu0 0.0
        %597 = vmatprep.subr.mxu0 0.0
        %598 = vmatpush1.msra.mxu0 0.0
        %599 = vmatprep.subr.mxu0 0.0
        %600 = vmatpush1.msra.mxu0 0.0
        %601 = vmatprep.subr.mxu0 0.0
        %602 = vmatpush1.msra.mxu0 0.0
        %603 = vmatprep.subr.mxu0 0.0
        %604 = vmatpush1.msra.mxu0 0.0
        %605 = vmatprep.subr.mxu0 0.0
        %606 = vmatpush1.msra.mxu0 0.0
        %607 = vmatprep.subr.mxu0 0.0
        %608 = vmatpush1.msra.mxu0 0.0
        %609 = vmatprep.subr.mxu0 0.0
        %610 = vmatpush1.msra.mxu0 0.0
        %611 = vmatprep.subr.mxu0 0.0
        %612 = vmatpush1.msra.mxu0 0.0
        %613 = vmatprep.subr.mxu0 0.0
        %614 = vmatpush1.msra.mxu0 0.0
        %615 = vmatprep.subr.mxu0 0.0
        %616 = vmatpush1.msra.mxu0 0.0
        %617 = vmatprep.subr.mxu0 0.0
        %618 = vmatpush1.msra.mxu0 0.0
        %619 = vmatprep.subr.mxu0 0.0
        %620 = vmatpush1.msra.mxu0 0.0
        %621 = vmatprep.subr.mxu0 0.0
        %622 = vmatpush1.msra.mxu0 0.0
        %623 = vmatprep.subr.mxu0 0.0
        %624 = vmatpush1.msra.mxu0 0.0
        %625 = vmatprep.subr.mxu0 0.0
        %626 = vmatpush1.msra.mxu0 0.0
        %627 = vmatprep.subr.mxu0 0.0
        %628 = vmatpush1.msra.mxu0 0.0
        %629 = vmatprep.subr.mxu0 0.0
        %630 = vmatpush1.msra.mxu0 0.0
        %631 = vmatprep.subr.mxu0 0.0
        %632 = vmatpush1.msra.mxu0 0.0
        %633 = vmatprep.subr.mxu0 0.0
        %634 = vmatpush1.msra.mxu0 0.0
        %635 = vmatprep.subr.mxu0 0.0
        %636 = vmatpush1.msra.mxu0 0.0
        %637 = vmatprep.subr.mxu0 0.0
        %638 = vmatpush1.msra.mxu0 0.0
        %639 = vmatprep.subr.mxu0 0.0
        %640 = vmatpush1.msra.mxu0 0.0
        %641 = vmatprep.subr.mxu0 0.0
        %642 = vmatpush1.msra.mxu0 0.0
        %643 = vmatprep.subr.mxu0 0.0
        %644 = vmatpush1.msra.mxu0 0.0
        %645 = vmatprep.subr.mxu0 0.0
        %646 = vmatpush1.msra.mxu0 0.0
        %647 = vmatprep.subr.mxu0 0.0
        %648 = vmatpush1.msra.mxu0 0.0
        %649 = vmatprep.mubr.f32.mxu0 0.0
        %650 = vmatmul.mubr.f32.gmra.mrb[0].mxu0 %v568
        %v651 = vpop.f32.mrb[0].mxu0
        %v652 = vadd.f32 0.0, %v651
        %v653 = vpop.f32.mrb[0].mxu0
        %654 = vmatprep.mubr.f32.mxu0 0.0
        %655 = vmatmul.mubr.f32.gmra.mrb[0].mxu0 %v571
        %v656 = vpop.f32.mrb[0].mxu0
        %v657 = vadd.f32 0.0, %v656
        %v658 = vpop.f32.mrb[0].mxu0
        %659 = vmatprep.mubr.f32.mxu0 0.0
        %660 = vmatmul.mubr.f32.gmra.mrb[0].mxu0 %v574
        %v661 = vpop.f32.mrb[0].mxu0
        %v662 = vadd.f32 0.0, %v661
        %v663 = vpop.f32.mrb[0].mxu0
        %664 = vmatprep.mubr.f32.mxu0 0.0
        %665 = vmatmul.mubr.f32.gmra.mrb[0].mxu0 %v577
        %v666 = vpop.f32.mrb[0].mxu0
        %v667 = vadd.f32 0.0, %v666
        %v668 = vpop.f32.mrb[0].mxu0
        %669 = vmatprep.mubr.f32.mxu0 0.0
        %670 = vmatmul.mubr.f32.gmra.mrb[0].mxu0 %v580
        %v671 = vpop.f32.mrb[0].mxu0
        %v672 = vadd.f32 0.0, %v671
        %v673 = vpop.f32.mrb[0].mxu0
        %674 = vmatprep.mubr.f32.mxu0 0.0
        %675 = vmatmul.mubr.f32.gmra.mrb[0].mxu0 %v583
        %v676 = vpop.f32.mrb[0].mxu0
        %v677 = vadd.f32 0.0, %v676
        %v678 = vpop.f32.mrb[0].mxu0
        %679 = vdwg.mxu0
        %v680 = vmax.f32 %v652, 0.0
        %v681 = vmax.f32 %v657, 0.0
        %v682 = vmax.f32 %v662, 0.0
        %v683 = vmax.f32 %v667, 0.0
        %v684 = vmax.f32 %v672, 0.0
        %v685 = vmax.f32 %v677, 0.0
        %690 = vrot.lane.b32.xlu0 %v682, 16
        %v691 = vpop.permute.xlu0 %690
        %692 = vrot.lane.b32.xlu0 %v683, 16
        %v693 = vpop.permute.xlu0 %692
        %694 = vrot.lane.b32.xlu0 %v684, 16
        %v695 = vpop.permute.xlu0 %694
        %696 = vrot.lane.b32.xlu0 %v685, 16
        %v697 = vpop.permute.xlu0 %696
        %vm702 = vcmask 130048
        %v703 = vsel %vm702, %v680, %v691
        %v704 = vsel %vm702, %v681, %v693
        %v705 = vsel %vm702, %v682, %v695
        %v706 = vsel %vm702, %v683, %v697
        %s707 = scalar_lea.vmem %s3, 96
        %v708 = vld [vmem:[%s707] sm:$0xff]
        %v709 = vld [vmem:[%s707 + $0x8] sm:$0xff]
        %v710 = vld [vmem:[%s707 + $0x10] sm:$0xff]
        %v711 = vld [vmem:[%s707 + $0x18] sm:$0xff]
        %v712 = vld [vmem:[%s707 + $0x20] sm:$0xff]
        %v713 = vld [vmem:[%s707 + $0x28] sm:$0xff]
        %v715 = vsel %vm241, %v708, 0
        %v718 = vsel %vm241, %v709, 0
        %v721 = vsel %vm241, %v710, 0
        %v724 = vsel %vm241, %v711, 0
        %v727 = vsel %vm241, %v712, 0
        %v730 = vsel %vm241, %v713, 0
        %732 = vmatprep.subr.mxu0 0.0
        %733 = vmatpush1.msra.mxu0 %v703
        %734 = vmatprep.subr.mxu0 0.0
        %735 = vmatpush1.msra.mxu0 %v704
        %736 = vmatprep.subr.mxu0 0.0
        %737 = vmatpush1.msra.mxu0 %v705
        %738 = vmatprep.subr.mxu0 0.0
        %739 = vmatpush1.msra.mxu0 %v706
        %740 = vmatprep.subr.mxu0 0.0
        %741 = vmatpush1.msra.mxu0 0.0
        %742 = vmatprep.subr.mxu0 0.0
        %743 = vmatpush1.msra.mxu0 0.0
        %744 = vmatprep.subr.mxu0 0.0
        %745 = vmatpush1.msra.mxu0 0.0
        %746 = vmatprep.subr.mxu0 0.0
        %747 = vmatpush1.msra.mxu0 0.0
        %748 = vmatprep.subr.mxu0 0.0
        %749 = vmatpush1.msra.mxu0 0.0
        %750 = vmatprep.subr.mxu0 0.0
        %751 = vmatpush1.msra.mxu0 0.0
        %752 = vmatprep.subr.mxu0 0.0
        %753 = vmatpush1.msra.mxu0 0.0
        %754 = vmatprep.subr.mxu0 0.0
        %755 = vmatpush1.msra.mxu0 0.0
        %756 = vmatprep.subr.mxu0 0.0
        %757 = vmatpush1.msra.mxu0 0.0
        %758 = vmatprep.subr.mxu0 0.0
        %759 = vmatpush1.msra.mxu0 0.0
        %760 = vmatprep.subr.mxu0 0.0
        %761 = vmatpush1.msra.mxu0 0.0
        %762 = vmatprep.subr.mxu0 0.0
        %763 = vmatpush1.msra.mxu0 0.0
        %764 = vmatprep.subr.mxu0 0.0
        %765 = vmatpush1.msra.mxu0 0.0
        %766 = vmatprep.subr.mxu0 0.0
        %767 = vmatpush1.msra.mxu0 0.0
        %768 = vmatprep.subr.mxu0 0.0
        %769 = vmatpush1.msra.mxu0 0.0
        %770 = vmatprep.subr.mxu0 0.0
        %771 = vmatpush1.msra.mxu0 0.0
        %772 = vmatprep.subr.mxu0 0.0
        %773 = vmatpush1.msra.mxu0 0.0
        %774 = vmatprep.subr.mxu0 0.0
        %775 = vmatpush1.msra.mxu0 0.0
        %776 = vmatprep.subr.mxu0 0.0
        %777 = vmatpush1.msra.mxu0 0.0
        %778 = vmatprep.subr.mxu0 0.0
        %779 = vmatpush1.msra.mxu0 0.0
        %780 = vmatprep.subr.mxu0 0.0
        %781 = vmatpush1.msra.mxu0 0.0
        %782 = vmatprep.subr.mxu0 0.0
        %783 = vmatpush1.msra.mxu0 0.0
        %784 = vmatprep.subr.mxu0 0.0
        %785 = vmatpush1.msra.mxu0 0.0
        %786 = vmatprep.subr.mxu0 0.0
        %787 = vmatpush1.msra.mxu0 0.0
        %788 = vmatprep.subr.mxu0 0.0
        %789 = vmatpush1.msra.mxu0 0.0
        %790 = vmatprep.subr.mxu0 0.0
        %791 = vmatpush1.msra.mxu0 0.0
        %792 = vmatprep.subr.mxu0 0.0
        %793 = vmatpush1.msra.mxu0 0.0
        %794 = vmatprep.subr.mxu0 0.0
        %795 = vmatpush1.msra.mxu0 0.0
        %796 = vmatprep.mubr.f32.mxu0 0.0
        %797 = vmatmul.mubr.f32.gmra.mrb[0].mxu0 %v715
        %v798 = vpop.f32.mrb[0].mxu0
        %v799 = vadd.f32 0.0, %v798
        %v800 = vpop.f32.mrb[0].mxu0
        %801 = vmatprep.mubr.f32.mxu0 0.0
        %802 = vmatmul.mubr.f32.gmra.mrb[0].mxu0 %v718
        %v803 = vpop.f32.mrb[0].mxu0
        %v804 = vadd.f32 0.0, %v803
        %v805 = vpop.f32.mrb[0].mxu0
        %806 = vmatprep.mubr.f32.mxu0 0.0
        %807 = vmatmul.mubr.f32.gmra.mrb[0].mxu0 %v721
        %v808 = vpop.f32.mrb[0].mxu0
        %v809 = vadd.f32 0.0, %v808
        %v810 = vpop.f32.mrb[0].mxu0
        %811 = vmatprep.mubr.f32.mxu0 0.0
        %812 = vmatmul.mubr.f32.gmra.mrb[0].mxu0 %v724
        %v813 = vpop.f32.mrb[0].mxu0
        %v814 = vadd.f32 0.0, %v813
        %v815 = vpop.f32.mrb[0].mxu0
        %816 = vmatprep.mubr.f32.mxu0 0.0
        %817 = vmatmul.mubr.f32.gmra.mrb[0].mxu0 %v727
        %v818 = vpop.f32.mrb[0].mxu0
        %v819 = vadd.f32 0.0, %v818
        %v820 = vpop.f32.mrb[0].mxu0
        %821 = vmatprep.mubr.f32.mxu0 0.0
        %822 = vmatmul.mubr.f32.gmra.mrb[0].mxu0 %v730
        %v823 = vpop.f32.mrb[0].mxu0
        %v824 = vadd.f32 0.0, %v823
        %v825 = vpop.f32.mrb[0].mxu0
        %826 = vdwg.mxu0
        %v827 = vmax.f32 %v799, 0.0
        %v828 = vmax.f32 %v804, 0.0
        %v829 = vmax.f32 %v809, 0.0
        %v830 = vmax.f32 %v814, 0.0
        %v831 = vmax.f32 %v819, 0.0
        %v832 = vmax.f32 %v824, 0.0
        %837 = vrot.lane.b32.xlu0 %v829, 32
        %v838 = vpop.permute.xlu0 %837
        %839 = vrot.lane.b32.xlu0 %v830, 32
        %v840 = vpop.permute.xlu0 %839
        %841 = vrot.lane.b32.xlu0 %v831, 32
        %v842 = vpop.permute.xlu0 %841
        %843 = vrot.lane.b32.xlu0 %v832, 32
        %v844 = vpop.permute.xlu0 %843
        %v849 = vsel %vm241, %v827, %v838
        %v850 = vsel %vm241, %v828, %v840
        %v851 = vsel %vm241, %v829, %v842
        %v852 = vsel %vm241, %v830, %v844
        %s853 = scalar_lea.vmem %s3, 144
        %v854 = vld [vmem:[%s853] sm:$0xff]
        %v855 = vld [vmem:[%s853 + $0x8] sm:$0xff]
        %v856 = vld [vmem:[%s853 + $0x10] sm:$0xff]
        %v857 = vld [vmem:[%s853 + $0x18] sm:$0xff]
        %v858 = vld [vmem:[%s853 + $0x20] sm:$0xff]
        %v859 = vld [vmem:[%s853 + $0x28] sm:$0xff]
        %v861 = vsel %vm241, %v854, 0
        %v864 = vsel %vm241, %v855, 0
        %v867 = vsel %vm241, %v856, 0
        %v870 = vsel %vm241, %v857, 0
        %v873 = vsel %vm241, %v858, 0
        %v876 = vsel %vm241, %v859, 0
        %878 = vmatprep.subr.mxu0 0.0
        %879 = vmatpush1.msra.mxu0 %v849
        %880 = vmatprep.subr.mxu0 0.0
        %881 = vmatpush1.msra.mxu0 %v850
        %882 = vmatprep.subr.mxu0 0.0
        %883 = vmatpush1.msra.mxu0 %v851
        %884 = vmatprep.subr.mxu0 0.0
        %885 = vmatpush1.msra.mxu0 %v852
        %886 = vmatprep.subr.mxu0 0.0
        %887 = vmatpush1.msra.mxu0 0.0
        %888 = vmatprep.subr.mxu0 0.0
        %889 = vmatpush1.msra.mxu0 0.0
        %890 = vmatprep.subr.mxu0 0.0
        %891 = vmatpush1.msra.mxu0 0.0
        %892 = vmatprep.subr.mxu0 0.0
        %893 = vmatpush1.msra.mxu0 0.0
        %894 = vmatprep.subr.mxu0 0.0
        %895 = vmatpush1.msra.mxu0 0.0
        %896 = vmatprep.subr.mxu0 0.0
        %897 = vmatpush1.msra.mxu0 0.0
        %898 = vmatprep.subr.mxu0 0.0
        %899 = vmatpush1.msra.mxu0 0.0
        %900 = vmatprep.subr.mxu0 0.0
        %901 = vmatpush1.msra.mxu0 0.0
        %902 = vmatprep.subr.mxu0 0.0
        %903 = vmatpush1.msra.mxu0 0.0
        %904 = vmatprep.subr.mxu0 0.0
        %905 = vmatpush1.msra.mxu0 0.0
        %906 = vmatprep.subr.mxu0 0.0
        %907 = vmatpush1.msra.mxu0 0.0
        %908 = vmatprep.subr.mxu0 0.0
        %909 = vmatpush1.msra.mxu0 0.0
        %910 = vmatprep.subr.mxu0 0.0
        %911 = vmatpush1.msra.mxu0 0.0
        %912 = vmatprep.subr.mxu0 0.0
        %913 = vmatpush1.msra.mxu0 0.0
        %914 = vmatprep.subr.mxu0 0.0
        %915 = vmatpush1.msra.mxu0 0.0
        %916 = vmatprep.subr.mxu0 0.0
        %917 = vmatpush1.msra.mxu0 0.0
        %918 = vmatprep.subr.mxu0 0.0
        %919 = vmatpush1.msra.mxu0 0.0
        %920 = vmatprep.subr.mxu0 0.0
        %921 = vmatpush1.msra.mxu0 0.0
        %922 = vmatprep.subr.mxu0 0.0
        %923 = vmatpush1.msra.mxu0 0.0
        %924 = vmatprep.subr.mxu0 0.0
        %925 = vmatpush1.msra.mxu0 0.0
        %926 = vmatprep.subr.mxu0 0.0
        %927 = vmatpush1.msra.mxu0 0.0
        %928 = vmatprep.subr.mxu0 0.0
        %929 = vmatpush1.msra.mxu0 0.0
        %930 = vmatprep.subr.mxu0 0.0
        %931 = vmatpush1.msra.mxu0 0.0
        %932 = vmatprep.subr.mxu0 0.0
        %933 = vmatpush1.msra.mxu0 0.0
        %934 = vmatprep.subr.mxu0 0.0
        %935 = vmatpush1.msra.mxu0 0.0
        %936 = vmatprep.subr.mxu0 0.0
        %937 = vmatpush1.msra.mxu0 0.0
        %938 = vmatprep.subr.mxu0 0.0
        %939 = vmatpush1.msra.mxu0 0.0
        %940 = vmatprep.subr.mxu0 0.0
        %941 = vmatpush1.msra.mxu0 0.0
        %942 = vmatprep.mubr.f32.mxu0 0.0
        %943 = vmatmul.mubr.f32.gmra.mrb[0].mxu0 %v861
        %v944 = vpop.f32.mrb[0].mxu0
        %v945 = vadd.f32 0.0, %v944
        %v946 = vpop.f32.mrb[0].mxu0
        %947 = vmatprep.mubr.f32.mxu0 0.0
        %948 = vmatmul.mubr.f32.gmra.mrb[0].mxu0 %v864
        %v949 = vpop.f32.mrb[0].mxu0
        %v950 = vadd.f32 0.0, %v949
        %v951 = vpop.f32.mrb[0].mxu0
        %952 = vmatprep.mubr.f32.mxu0 0.0
        %953 = vmatmul.mubr.f32.gmra.mrb[0].mxu0 %v867
        %v954 = vpop.f32.mrb[0].mxu0
        %v955 = vadd.f32 0.0, %v954
        %v956 = vpop.f32.mrb[0].mxu0
        %957 = vmatprep.mubr.f32.mxu0 0.0
        %958 = vmatmul.mubr.f32.gmra.mrb[0].mxu0 %v870
        %v959 = vpop.f32.mrb[0].mxu0
        %v960 = vadd.f32 0.0, %v959
        %v961 = vpop.f32.mrb[0].mxu0
        %962 = vmatprep.mubr.f32.mxu0 0.0
        %963 = vmatmul.mubr.f32.gmra.mrb[0].mxu0 %v873
        %v964 = vpop.f32.mrb[0].mxu0
        %v965 = vadd.f32 0.0, %v964
        %v966 = vpop.f32.mrb[0].mxu0
        %967 = vmatprep.mubr.f32.mxu0 0.0
        %968 = vmatmul.mubr.f32.gmra.mrb[0].mxu0 %v876
        %v969 = vpop.f32.mrb[0].mxu0
        %v970 = vadd.f32 0.0, %v969
        %v971 = vpop.f32.mrb[0].mxu0
        %972 = vdwg.mxu0
        %v973 = vmax.f32 %v945, 0.0
        %v974 = vmax.f32 %v950, 0.0
        %v975 = vmax.f32 %v955, 0.0
        %v976 = vmax.f32 %v960, 0.0
        %v977 = vmax.f32 %v965, 0.0
        %v978 = vmax.f32 %v970, 0.0
        %983 = vrot.lane.b32.xlu0 %v975, 64
        %v984 = vpop.permute.xlu0 %983
        %985 = vrot.lane.b32.xlu0 %v976, 64
        %v986 = vpop.permute.xlu0 %985
        %987 = vrot.lane.b32.xlu0 %v977, 64
        %v988 = vpop.permute.xlu0 %987
        %989 = vrot.lane.b32.xlu0 %v978, 64
        %v990 = vpop.permute.xlu0 %989
        %vm995 = vcmask 523264
        %v996 = vsel %vm995, %v973, %v984
        %v997 = vsel %vm995, %v974, %v986
        %v998 = vsel %vm995, %v975, %v988
        %v999 = vsel %vm995, %v976, %v990
        %s1000 = scalar_lea.vmem %s3, 192
        %v1001 = vld [vmem:[%s1000] sm:$0xff]
        %v1002 = vld [vmem:[%s1000 + $0x8] sm:$0xff]
        %v1003 = vld [vmem:[%s1000 + $0x10] sm:$0xff]
        %v1004 = vld [vmem:[%s1000 + $0x18] sm:$0xff]
        %v1005 = vld [vmem:[%s1000 + $0x20] sm:$0xff]
        %v1006 = vld [vmem:[%s1000 + $0x28] sm:$0xff]
        %v1008 = vsel %vm241, %v1001, 0
        %v1011 = vsel %vm241, %v1002, 0
        %v1014 = vsel %vm241, %v1003, 0
        %v1017 = vsel %vm241, %v1004, 0
        %v1020 = vsel %vm241, %v1005, 0
        %v1023 = vsel %vm241, %v1006, 0
        %1025 = vmatprep.subr.mxu0 0.0
        %1026 = vmatpush1.msra.mxu0 %v996
        %1027 = vmatprep.subr.mxu0 0.0
        %1028 = vmatpush1.msra.mxu0 %v997
        %1029 = vmatprep.subr.mxu0 0.0
        %1030 = vmatpush1.msra.mxu0 %v998
        %1031 = vmatprep.subr.mxu0 0.0
        %1032 = vmatpush1.msra.mxu0 %v999
        %1033 = vmatprep.subr.mxu0 0.0
        %1034 = vmatpush1.msra.mxu0 0.0
        %1035 = vmatprep.subr.mxu0 0.0
        %1036 = vmatpush1.msra.mxu0 0.0
        %1037 = vmatprep.subr.mxu0 0.0
        %1038 = vmatpush1.msra.mxu0 0.0
        %1039 = vmatprep.subr.mxu0 0.0
        %1040 = vmatpush1.msra.mxu0 0.0
        %1041 = vmatprep.subr.mxu0 0.0
        %1042 = vmatpush1.msra.mxu0 0.0
        %1043 = vmatprep.subr.mxu0 0.0
        %1044 = vmatpush1.msra.mxu0 0.0
        %1045 = vmatprep.subr.mxu0 0.0
        %1046 = vmatpush1.msra.mxu0 0.0
        %1047 = vmatprep.subr.mxu0 0.0
        %1048 = vmatpush1.msra.mxu0 0.0
        %1049 = vmatprep.subr.mxu0 0.0
        %1050 = vmatpush1.msra.mxu0 0.0
        %1051 = vmatprep.subr.mxu0 0.0
        %1052 = vmatpush1.msra.mxu0 0.0
        %1053 = vmatprep.subr.mxu0 0.0
        %1054 = vmatpush1.msra.mxu0 0.0
        %1055 = vmatprep.subr.mxu0 0.0
        %1056 = vmatpush1.msra.mxu0 0.0
        %1057 = vmatprep.subr.mxu0 0.0
        %1058 = vmatpush1.msra.mxu0 0.0
        %1059 = vmatprep.subr.mxu0 0.0
        %1060 = vmatpush1.msra.mxu0 0.0
        %1061 = vmatprep.subr.mxu0 0.0
        %1062 = vmatpush1.msra.mxu0 0.0
        %1063 = vmatprep.subr.mxu0 0.0
        %1064 = vmatpush1.msra.mxu0 0.0
        %1065 = vmatprep.subr.mxu0 0.0
        %1066 = vmatpush1.msra.mxu0 0.0
        %1067 = vmatprep.subr.mxu0 0.0
        %1068 = vmatpush1.msra.mxu0 0.0
        %1069 = vmatprep.subr.mxu0 0.0
        %1070 = vmatpush1.msra.mxu0 0.0
        %1071 = vmatprep.subr.mxu0 0.0
        %1072 = vmatpush1.msra.mxu0 0.0
        %1073 = vmatprep.subr.mxu0 0.0
        %1074 = vmatpush1.msra.mxu0 0.0
        %1075 = vmatprep.subr.mxu0 0.0
        %1076 = vmatpush1.msra.mxu0 0.0
        %1077 = vmatprep.subr.mxu0 0.0
        %1078 = vmatpush1.msra.mxu0 0.0
        %1079 = vmatprep.subr.mxu0 0.0
        %1080 = vmatpush1.msra.mxu0 0.0
        %1081 = vmatprep.subr.mxu0 0.0
        %1082 = vmatpush1.msra.mxu0 0.0
        %1083 = vmatprep.subr.mxu0 0.0
        %1084 = vmatpush1.msra.mxu0 0.0
        %1085 = vmatprep.subr.mxu0 0.0
        %1086 = vmatpush1.msra.mxu0 0.0
        %1087 = vmatprep.subr.mxu0 0.0
        %1088 = vmatpush1.msra.mxu0 0.0
        %1089 = vmatprep.mubr.f32.mxu0 0.0
        %1090 = vmatmul.mubr.f32.gmra.mrb[0].mxu0 %v1008
        %v1091 = vpop.f32.mrb[0].mxu0
        %v1092 = vadd.f32 0.0, %v1091
        %v1093 = vpop.f32.mrb[0].mxu0
        %1094 = vmatprep.mubr.f32.mxu0 0.0
        %1095 = vmatmul.mubr.f32.gmra.mrb[0].mxu0 %v1011
        %v1096 = vpop.f32.mrb[0].mxu0
        %v1097 = vadd.f32 0.0, %v1096
        %v1098 = vpop.f32.mrb[0].mxu0
        %1099 = vmatprep.mubr.f32.mxu0 0.0
        %1100 = vmatmul.mubr.f32.gmra.mrb[0].mxu0 %v1014
        %v1101 = vpop.f32.mrb[0].mxu0
        %v1102 = vadd.f32 0.0, %v1101
        %v1103 = vpop.f32.mrb[0].mxu0
        %1104 = vmatprep.mubr.f32.mxu0 0.0
        %1105 = vmatmul.mubr.f32.gmra.mrb[0].mxu0 %v1017
        %v1106 = vpop.f32.mrb[0].mxu0
        %v1107 = vadd.f32 0.0, %v1106
        %v1108 = vpop.f32.mrb[0].mxu0
        %1109 = vmatprep.mubr.f32.mxu0 0.0
        %1110 = vmatmul.mubr.f32.gmra.mrb[0].mxu0 %v1020
        %v1111 = vpop.f32.mrb[0].mxu0
        %v1112 = vadd.f32 0.0, %v1111
        %v1113 = vpop.f32.mrb[0].mxu0
        %1114 = vmatprep.mubr.f32.mxu0 0.0
        %1115 = vmatmul.mubr.f32.gmra.mrb[0].mxu0 %v1023
        %v1116 = vpop.f32.mrb[0].mxu0
        %v1117 = vadd.f32 0.0, %v1116
        %v1118 = vpop.f32.mrb[0].mxu0
        %1119 = vdwg.mxu0
        %v1120 = vmax.f32 %v1092, 0.0
        %v1121 = vmax.f32 %v1097, 0.0
        %v1122 = vmax.f32 %v1102, 0.0
        %v1123 = vmax.f32 %v1107, 0.0
        %v1124 = vmax.f32 %v1112, 0.0
        %v1125 = vmax.f32 %v1117, 0.0
        %s1126 = scalar_lea.vmem %s3, 240
        %v1127 = vld [vmem:[%s1126] sm:$0xff]
        %v1128 = vld [vmem:[%s1126 + $0x8] sm:$0xff]
        %v1129 = vld [vmem:[%s1126 + $0x10] sm:$0xff]
        %v1130 = vld [vmem:[%s1126 + $0x18] sm:$0xff]
        %v1131 = vld [vmem:[%s1126 + $0x20] sm:$0xff]
        %v1132 = vld [vmem:[%s1126 + $0x28] sm:$0xff]
        %v1134 = vsel %vm241, %v1127, 0
        %v1137 = vsel %vm241, %v1128, 0
        %v1140 = vsel %vm241, %v1129, 0
        %v1143 = vsel %vm241, %v1130, 0
        %v1146 = vsel %vm241, %v1131, 0
        %v1149 = vsel %vm241, %v1132, 0
        %1151 = vmatprep.subr.mxu0 %v1122
        %1152 = vmatpush1.msra.mxu0 %v1120
        %1153 = vmatprep.subr.mxu0 %v1123
        %1154 = vmatpush1.msra.mxu0 %v1121
        %1155 = vmatprep.subr.mxu0 %v1124
        %1156 = vmatpush1.msra.mxu0 %v1122
        %1157 = vmatprep.subr.mxu0 %v1125
        %1158 = vmatpush1.msra.mxu0 %v1123
        %1159 = vmatprep.subr.mxu0 0.0
        %1160 = vmatpush1.msra.mxu0 0.0
        %1161 = vmatprep.subr.mxu0 0.0
        %1162 = vmatpush1.msra.mxu0 0.0
        %1163 = vmatprep.subr.mxu0 0.0
        %1164 = vmatpush1.msra.mxu0 0.0
        %1165 = vmatprep.subr.mxu0 0.0
        %1166 = vmatpush1.msra.mxu0 0.0
        %1167 = vmatprep.subr.mxu0 0.0
        %1168 = vmatpush1.msra.mxu0 0.0
        %1169 = vmatprep.subr.mxu0 0.0
        %1170 = vmatpush1.msra.mxu0 0.0
        %1171 = vmatprep.subr.mxu0 0.0
        %1172 = vmatpush1.msra.mxu0 0.0
        %1173 = vmatprep.subr.mxu0 0.0
        %1174 = vmatpush1.msra.mxu0 0.0
        %1175 = vmatprep.subr.mxu0 0.0
        %1176 = vmatpush1.msra.mxu0 0.0
        %1177 = vmatprep.subr.mxu0 0.0
        %1178 = vmatpush1.msra.mxu0 0.0
        %1179 = vmatprep.subr.mxu0 0.0
        %1180 = vmatpush1.msra.mxu0 0.0
        %1181 = vmatprep.subr.mxu0 0.0
        %1182 = vmatpush1.msra.mxu0 0.0
        %1183 = vmatprep.subr.mxu0 0.0
        %1184 = vmatpush1.msra.mxu0 0.0
        %1185 = vmatprep.subr.mxu0 0.0
        %1186 = vmatpush1.msra.mxu0 0.0
        %1187 = vmatprep.subr.mxu0 0.0
        %1188 = vmatpush1.msra.mxu0 0.0
        %1189 = vmatprep.subr.mxu0 0.0
        %1190 = vmatpush1.msra.mxu0 0.0
        %1191 = vmatprep.subr.mxu0 0.0
        %1192 = vmatpush1.msra.mxu0 0.0
        %1193 = vmatprep.subr.mxu0 0.0
        %1194 = vmatpush1.msra.mxu0 0.0
        %1195 = vmatprep.subr.mxu0 0.0
        %1196 = vmatpush1.msra.mxu0 0.0
        %1197 = vmatprep.subr.mxu0 0.0
        %1198 = vmatpush1.msra.mxu0 0.0
        %1199 = vmatprep.subr.mxu0 0.0
        %1200 = vmatpush1.msra.mxu0 0.0
        %1201 = vmatprep.subr.mxu0 0.0
        %1202 = vmatpush1.msra.mxu0 0.0
        %1203 = vmatprep.subr.mxu0 0.0
        %1204 = vmatpush1.msra.mxu0 0.0
        %1205 = vmatprep.subr.mxu0 0.0
        %1206 = vmatpush1.msra.mxu0 0.0
        %1207 = vmatprep.subr.mxu0 0.0
        %1208 = vmatpush1.msra.mxu0 0.0
        %1209 = vmatprep.subr.mxu0 0.0
        %1210 = vmatpush1.msra.mxu0 0.0
        %1211 = vmatprep.subr.mxu0 0.0
        %1212 = vmatpush1.msra.mxu0 0.0
        %1213 = vmatprep.subr.mxu0 0.0
        %1214 = vmatpush1.msra.mxu0 0.0
        %1215 = vmatprep.mubr.f32.mxu0 0.0
        %1216 = vmatmul.mubr.f32.gmra.mrb[0].mxu0 %v1134
        %v1217 = vpop.f32.mrb[0].mxu0
        %v1218 = vadd.f32 0.0, %v1217
        %v1219 = vpop.f32.mrb[0].mxu0
        %v1220 = vadd.f32 0.0, %v1219
        %1221 = vmatprep.mubr.f32.mxu0 0.0
        %1222 = vmatmul.mubr.f32.gmra.mrb[0].mxu0 %v1137
        %v1223 = vpop.f32.mrb[0].mxu0
        %v1224 = vadd.f32 0.0, %v1223
        %v1225 = vpop.f32.mrb[0].mxu0
        %v1226 = vadd.f32 0.0, %v1225
        %1227 = vmatprep.mubr.f32.mxu0 0.0
        %1228 = vmatmul.mubr.f32.gmra.mrb[0].mxu0 %v1140
        %v1229 = vpop.f32.mrb[0].mxu0
        %v1230 = vadd.f32 0.0, %v1229
        %v1231 = vpop.f32.mrb[0].mxu0
        %v1232 = vadd.f32 0.0, %v1231
        %1233 = vmatprep.mubr.f32.mxu0 0.0
        %1234 = vmatmul.mubr.f32.gmra.mrb[0].mxu0 %v1143
        %v1235 = vpop.f32.mrb[0].mxu0
        %v1236 = vadd.f32 0.0, %v1235
        %v1237 = vpop.f32.mrb[0].mxu0
        %v1238 = vadd.f32 0.0, %v1237
        %1239 = vmatprep.mubr.f32.mxu0 0.0
        %1240 = vmatmul.mubr.f32.gmra.mrb[0].mxu0 %v1146
        %v1241 = vpop.f32.mrb[0].mxu0
        %v1242 = vadd.f32 0.0, %v1241
        %v1243 = vpop.f32.mrb[0].mxu0
        %v1244 = vadd.f32 0.0, %v1243
        %1245 = vmatprep.mubr.f32.mxu0 0.0
        %1246 = vmatmul.mubr.f32.gmra.mrb[0].mxu0 %v1149
        %v1247 = vpop.f32.mrb[0].mxu0
        %v1248 = vadd.f32 0.0, %v1247
        %v1249 = vpop.f32.mrb[0].mxu0
        %v1250 = vadd.f32 0.0, %v1249
        %1251 = vdwg.mxu0
        %v1252 = vmax.f32 %v1218, 0.0
        %v1253 = vmax.f32 %v1220, 0.0
        %v1254 = vmax.f32 %v1224, 0.0
        %v1255 = vmax.f32 %v1226, 0.0
        %v1256 = vmax.f32 %v1230, 0.0
        %v1257 = vmax.f32 %v1232, 0.0
        %v1258 = vmax.f32 %v1236, 0.0
        %v1259 = vmax.f32 %v1238, 0.0
        %v1260 = vmax.f32 %v1242, 0.0
        %v1261 = vmax.f32 %v1244, 0.0
        %v1262 = vmax.f32 %v1248, 0.0
        %v1263 = vmax.f32 %v1250, 0.0
        %s1264 = scalar_lea.vmem %s3, 288
        %v1265 = vld [vmem:[%s1264] sm:$0xff]
        %v1266 = vld [vmem:[%s1264 + $0x8] sm:$0xff]
        %v1267 = vld [vmem:[%s1264 + $0x10] sm:$0xff]
        %v1268 = vld [vmem:[%s1264 + $0x18] sm:$0xff]
        %v1269 = vld [vmem:[%s1264 + $0x20] sm:$0xff]
        %v1270 = vld [vmem:[%s1264 + $0x28] sm:$0xff]
        %v1272 = vsel %vm241, %v1265, 0
        %v1275 = vsel %vm241, %v1266, 0
        %v1278 = vsel %vm241, %v1267, 0
        %v1281 = vsel %vm241, %v1268, 0
        %v1284 = vsel %vm241, %v1269, 0
        %v1287 = vsel %vm241, %v1270, 0
        %1289 = vmatprep.subr.mxu0 %v1253
        %1290 = vmatpush1.msra.mxu0 %v1252
        %1291 = vmatprep.subr.mxu0 %v1255
        %1292 = vmatpush1.msra.mxu0 %v1254
        %1293 = vmatprep.subr.mxu0 %v1257
        %1294 = vmatpush1.msra.mxu0 %v1256
        %1295 = vmatprep.subr.mxu0 %v1259
        %1296 = vmatpush1.msra.mxu0 %v1258
        %1297 = vmatprep.subr.mxu0 0.0
        %1298 = vmatpush1.msra.mxu0 0.0
        %1299 = vmatprep.subr.mxu0 0.0
        %1300 = vmatpush1.msra.mxu0 0.0
        %1301 = vmatprep.subr.mxu0 0.0
        %1302 = vmatpush1.msra.mxu0 0.0
        %1303 = vmatprep.subr.mxu0 0.0
        %1304 = vmatpush1.msra.mxu0 0.0
        %1305 = vmatprep.subr.mxu0 0.0
        %1306 = vmatpush1.msra.mxu0 0.0
        %1307 = vmatprep.subr.mxu0 0.0
        %1308 = vmatpush1.msra.mxu0 0.0
        %1309 = vmatprep.subr.mxu0 0.0
        %1310 = vmatpush1.msra.mxu0 0.0
        %1311 = vmatprep.subr.mxu0 0.0
        %1312 = vmatpush1.msra.mxu0 0.0
        %1313 = vmatprep.subr.mxu0 0.0
        %1314 = vmatpush1.msra.mxu0 0.0
        %1315 = vmatprep.subr.mxu0 0.0
        %1316 = vmatpush1.msra.mxu0 0.0
        %1317 = vmatprep.subr.mxu0 0.0
        %1318 = vmatpush1.msra.mxu0 0.0
        %1319 = vmatprep.subr.mxu0 0.0
        %1320 = vmatpush1.msra.mxu0 0.0
        %1321 = vmatprep.subr.mxu0 0.0
        %1322 = vmatpush1.msra.mxu0 0.0
        %1323 = vmatprep.subr.mxu0 0.0
        %1324 = vmatpush1.msra.mxu0 0.0
        %1325 = vmatprep.subr.mxu0 0.0
        %1326 = vmatpush1.msra.mxu0 0.0
        %1327 = vmatprep.subr.mxu0 0.0
        %1328 = vmatpush1.msra.mxu0 0.0
        %1329 = vmatprep.subr.mxu0 0.0
        %1330 = vmatpush1.msra.mxu0 0.0
        %1331 = vmatprep.subr.mxu0 0.0
        %1332 = vmatpush1.msra.mxu0 0.0
        %1333 = vmatprep.subr.mxu0 0.0
        %1334 = vmatpush1.msra.mxu0 0.0
        %1335 = vmatprep.subr.mxu0 0.0
        %1336 = vmatpush1.msra.mxu0 0.0
        %1337 = vmatprep.subr.mxu0 0.0
        %1338 = vmatpush1.msra.mxu0 0.0
        %1339 = vmatprep.subr.mxu0 0.0
        %1340 = vmatpush1.msra.mxu0 0.0
        %1341 = vmatprep.subr.mxu0 0.0
        %1342 = vmatpush1.msra.mxu0 0.0
        %1343 = vmatprep.subr.mxu0 0.0
        %1344 = vmatpush1.msra.mxu0 0.0
        %1345 = vmatprep.subr.mxu0 0.0
        %1346 = vmatpush1.msra.mxu0 0.0
        %1347 = vmatprep.subr.mxu0 0.0
        %1348 = vmatpush1.msra.mxu0 0.0
        %1349 = vmatprep.subr.mxu0 0.0
        %1350 = vmatpush1.msra.mxu0 0.0
        %1351 = vmatprep.subr.mxu0 0.0
        %1352 = vmatpush1.msra.mxu0 0.0
        %1353 = vmatprep.mubr.f32.mxu0 0.0
        %1354 = vmatmul.mubr.f32.gmra.mrb[0].mxu0 %v1272
        %v1355 = vpop.f32.mrb[0].mxu0
        %v1356 = vadd.f32 0.0, %v1355
        %v1357 = vpop.f32.mrb[0].mxu0
        %v1358 = vadd.f32 0.0, %v1357
        %1359 = vmatprep.mubr.f32.mxu0 0.0
        %1360 = vmatmul.mubr.f32.gmra.mrb[0].mxu0 %v1275
        %v1361 = vpop.f32.mrb[0].mxu0
        %v1362 = vadd.f32 0.0, %v1361
        %v1363 = vpop.f32.mrb[0].mxu0
        %v1364 = vadd.f32 0.0, %v1363
        %1365 = vmatprep.mubr.f32.mxu0 0.0
        %1366 = vmatmul.mubr.f32.gmra.mrb[0].mxu0 %v1278
        %v1367 = vpop.f32.mrb[0].mxu0
        %v1368 = vadd.f32 0.0, %v1367
        %v1369 = vpop.f32.mrb[0].mxu0
        %v1370 = vadd.f32 0.0, %v1369
        %1371 = vmatprep.mubr.f32.mxu0 0.0
        %1372 = vmatmul.mubr.f32.gmra.mrb[0].mxu0 %v1281
        %v1373 = vpop.f32.mrb[0].mxu0
        %v1374 = vadd.f32 0.0, %v1373
        %v1375 = vpop.f32.mrb[0].mxu0
        %v1376 = vadd.f32 0.0, %v1375
        %1377 = vmatprep.mubr.f32.mxu0 0.0
        %1378 = vmatmul.mubr.f32.gmra.mrb[0].mxu0 %v1284
        %v1379 = vpop.f32.mrb[0].mxu0
        %v1380 = vadd.f32 0.0, %v1379
        %v1381 = vpop.f32.mrb[0].mxu0
        %v1382 = vadd.f32 0.0, %v1381
        %1383 = vmatprep.mubr.f32.mxu0 0.0
        %1384 = vmatmul.mubr.f32.gmra.mrb[0].mxu0 %v1287
        %v1385 = vpop.f32.mrb[0].mxu0
        %v1386 = vadd.f32 0.0, %v1385
        %v1387 = vpop.f32.mrb[0].mxu0
        %v1388 = vadd.f32 0.0, %v1387
        %1389 = vdwg.mxu0
        %1390 = vmatprep.subr.mxu0 %v1257
        %1391 = vmatpush1.msra.mxu0 %v1256
        %1392 = vmatprep.subr.mxu0 %v1259
        %1393 = vmatpush1.msra.mxu0 %v1258
        %1394 = vmatprep.subr.mxu0 %v1261
        %1395 = vmatpush1.msra.mxu0 %v1260
        %1396 = vmatprep.subr.mxu0 %v1263
        %1397 = vmatpush1.msra.mxu0 %v1262
        %1398 = vmatprep.subr.mxu0 0.0
        %1399 = vmatpush1.msra.mxu0 0.0
        %1400 = vmatprep.subr.mxu0 0.0
        %1401 = vmatpush1.msra.mxu0 0.0
        %1402 = vmatprep.subr.mxu0 0.0
        %1403 = vmatpush1.msra.mxu0 0.0
        %1404 = vmatprep.subr.mxu0 0.0
        %1405 = vmatpush1.msra.mxu0 0.0
        %1406 = vmatprep.subr.mxu0 0.0
        %1407 = vmatpush1.msra.mxu0 0.0
        %1408 = vmatprep.subr.mxu0 0.0
        %1409 = vmatpush1.msra.mxu0 0.0
        %1410 = vmatprep.subr.mxu0 0.0
        %1411 = vmatpush1.msra.mxu0 0.0
        %1412 = vmatprep.subr.mxu0 0.0
        %1413 = vmatpush1.msra.mxu0 0.0
        %1414 = vmatprep.subr.mxu0 0.0
        %1415 = vmatpush1.msra.mxu0 0.0
        %1416 = vmatprep.subr.mxu0 0.0
        %1417 = vmatpush1.msra.mxu0 0.0
        %1418 = vmatprep.subr.mxu0 0.0
        %1419 = vmatpush1.msra.mxu0 0.0
        %1420 = vmatprep.subr.mxu0 0.0
        %1421 = vmatpush1.msra.mxu0 0.0
        %1422 = vmatprep.subr.mxu0 0.0
        %1423 = vmatpush1.msra.mxu0 0.0
        %1424 = vmatprep.subr.mxu0 0.0
        %1425 = vmatpush1.msra.mxu0 0.0
        %1426 = vmatprep.subr.mxu0 0.0
        %1427 = vmatpush1.msra.mxu0 0.0
        %1428 = vmatprep.subr.mxu0 0.0
        %1429 = vmatpush1.msra.mxu0 0.0
        %1430 = vmatprep.subr.mxu0 0.0
        %1431 = vmatpush1.msra.mxu0 0.0
        %1432 = vmatprep.subr.mxu0 0.0
        %1433 = vmatpush1.msra.mxu0 0.0
        %1434 = vmatprep.subr.mxu0 0.0
        %1435 = vmatpush1.msra.mxu0 0.0
        %1436 = vmatprep.subr.mxu0 0.0
        %1437 = vmatpush1.msra.mxu0 0.0
        %1438 = vmatprep.subr.mxu0 0.0
        %1439 = vmatpush1.msra.mxu0 0.0
        %1440 = vmatprep.subr.mxu0 0.0
        %1441 = vmatpush1.msra.mxu0 0.0
        %1442 = vmatprep.subr.mxu0 0.0
        %1443 = vmatpush1.msra.mxu0 0.0
        %1444 = vmatprep.subr.mxu0 0.0
        %1445 = vmatpush1.msra.mxu0 0.0
        %1446 = vmatprep.subr.mxu0 0.0
        %1447 = vmatpush1.msra.mxu0 0.0
        %1448 = vmatprep.subr.mxu0 0.0
        %1449 = vmatpush1.msra.mxu0 0.0
        %1450 = vmatprep.subr.mxu0 0.0
        %1451 = vmatpush1.msra.mxu0 0.0
        %1452 = vmatprep.subr.mxu0 0.0
        %1453 = vmatpush1.msra.mxu0 0.0
        %1454 = vmatprep.mubr.f32.mxu0 0.0
        %1455 = vmatmul.mubr.f32.gmra.mrb[0].mxu0 %v1272
        %v1456 = vpop.f32.mrb[0].mxu0
        %v1457 = vadd.f32 0.0, %v1456
        %v1458 = vpop.f32.mrb[0].mxu0
        %v1459 = vadd.f32 0.0, %v1458
        %1460 = vmatprep.mubr.f32.mxu0 0.0
        %1461 = vmatmul.mubr.f32.gmra.mrb[0].mxu0 %v1275
        %v1462 = vpop.f32.mrb[0].mxu0
        %v1463 = vadd.f32 0.0, %v1462
        %v1464 = vpop.f32.mrb[0].mxu0
        %v1465 = vadd.f32 0.0, %v1464
        %1466 = vmatprep.mubr.f32.mxu0 0.0
        %1467 = vmatmul.mubr.f32.gmra.mrb[0].mxu0 %v1278
        %v1468 = vpop.f32.mrb[0].mxu0
        %v1469 = vadd.f32 0.0, %v1468
        %v1470 = vpop.f32.mrb[0].mxu0
        %v1471 = vadd.f32 0.0, %v1470
        %1472 = vmatprep.mubr.f32.mxu0 0.0
        %1473 = vmatmul.mubr.f32.gmra.mrb[0].mxu0 %v1281
        %v1474 = vpop.f32.mrb[0].mxu0
        %v1475 = vadd.f32 0.0, %v1474
        %v1476 = vpop.f32.mrb[0].mxu0
        %v1477 = vadd.f32 0.0, %v1476
        %1478 = vmatprep.mubr.f32.mxu0 0.0
        %1479 = vmatmul.mubr.f32.gmra.mrb[0].mxu0 %v1284
        %v1480 = vpop.f32.mrb[0].mxu0
        %v1481 = vadd.f32 0.0, %v1480
        %v1482 = vpop.f32.mrb[0].mxu0
        %v1483 = vadd.f32 0.0, %v1482
        %1484 = vmatprep.mubr.f32.mxu0 0.0
        %1485 = vmatmul.mubr.f32.gmra.mrb[0].mxu0 %v1287
        %v1486 = vpop.f32.mrb[0].mxu0
        %v1487 = vadd.f32 0.0, %v1486
        %v1488 = vpop.f32.mrb[0].mxu0
        %v1489 = vadd.f32 0.0, %v1488
        %1490 = vdwg.mxu0
        %v1491 = vmax.f32 %v1356, 0.0
        %v1492 = vmax.f32 %v1358, 0.0
        %v1493 = vmax.f32 %v1457, 0.0
        %v1494 = vmax.f32 %v1459, 0.0
        %v1495 = vmax.f32 %v1362, 0.0
        %v1496 = vmax.f32 %v1364, 0.0
        %v1497 = vmax.f32 %v1463, 0.0
        %v1498 = vmax.f32 %v1465, 0.0
        %v1499 = vmax.f32 %v1368, 0.0
        %v1500 = vmax.f32 %v1370, 0.0
        %v1501 = vmax.f32 %v1469, 0.0
        %v1502 = vmax.f32 %v1471, 0.0
        %v1503 = vmax.f32 %v1374, 0.0
        %v1504 = vmax.f32 %v1376, 0.0
        %v1505 = vmax.f32 %v1475, 0.0
        %v1506 = vmax.f32 %v1477, 0.0
        %v1507 = vmax.f32 %v1380, 0.0
        %v1508 = vmax.f32 %v1382, 0.0
        %v1509 = vmax.f32 %v1481, 0.0
        %v1510 = vmax.f32 %v1483, 0.0
        %v1511 = vmax.f32 %v1386, 0.0
        %v1512 = vmax.f32 %v1388, 0.0
        %v1513 = vmax.f32 %v1487, 0.0
        %v1514 = vmax.f32 %v1489, 0.0
        %v1515 = vld [vmem:[%s4] sm:$0xff]
        %v1517 = vsel %vm241, %v1515, 0
        %1519 = vmatprep.subr.mxu0 %v1492
        %1520 = vmatpush1.msra.mxu0 %v1491
        %1521 = vmatprep.subr.mxu0 %v1496
        %1522 = vmatpush1.msra.mxu0 %v1495
        %1523 = vmatprep.subr.mxu0 %v1500
        %1524 = vmatpush1.msra.mxu0 %v1499
        %1525 = vmatprep.subr.mxu0 %v1504
        %1526 = vmatpush1.msra.mxu0 %v1503
        %1527 = vmatprep.subr.mxu0 0.0
        %1528 = vmatpush1.msra.mxu0 0.0
        %1529 = vmatprep.subr.mxu0 0.0
        %1530 = vmatpush1.msra.mxu0 0.0
        %1531 = vmatprep.subr.mxu0 0.0
        %1532 = vmatpush1.msra.mxu0 0.0
        %1533 = vmatprep.subr.mxu0 0.0
        %1534 = vmatpush1.msra.mxu0 0.0
        %1535 = vmatprep.subr.mxu0 0.0
        %1536 = vmatpush1.msra.mxu0 0.0
        %1537 = vmatprep.subr.mxu0 0.0
        %1538 = vmatpush1.msra.mxu0 0.0
        %1539 = vmatprep.subr.mxu0 0.0
        %1540 = vmatpush1.msra.mxu0 0.0
        %1541 = vmatprep.subr.mxu0 0.0
        %1542 = vmatpush1.msra.mxu0 0.0
        %1543 = vmatprep.subr.mxu0 0.0
        %1544 = vmatpush1.msra.mxu0 0.0
        %1545 = vmatprep.subr.mxu0 0.0
        %1546 = vmatpush1.msra.mxu0 0.0
        %1547 = vmatprep.subr.mxu0 0.0
        %1548 = vmatpush1.msra.mxu0 0.0
        %1549 = vmatprep.subr.mxu0 0.0
        %1550 = vmatpush1.msra.mxu0 0.0
        %1551 = vmatprep.subr.mxu0 0.0
        %1552 = vmatpush1.msra.mxu0 0.0
        %1553 = vmatprep.subr.mxu0 0.0
        %1554 = vmatpush1.msra.mxu0 0.0
        %1555 = vmatprep.subr.mxu0 0.0
        %1556 = vmatpush1.msra.mxu0 0.0
        %1557 = vmatprep.subr.mxu0 0.0
        %1558 = vmatpush1.msra.mxu0 0.0
        %1559 = vmatprep.subr.mxu0 0.0
        %1560 = vmatpush1.msra.mxu0 0.0
        %1561 = vmatprep.subr.mxu0 0.0
        %1562 = vmatpush1.msra.mxu0 0.0
        %1563 = vmatprep.subr.mxu0 0.0
        %1564 = vmatpush1.msra.mxu0 0.0
        %1565 = vmatprep.subr.mxu0 0.0
        %1566 = vmatpush1.msra.mxu0 0.0
        %1567 = vmatprep.subr.mxu0 0.0
        %1568 = vmatpush1.msra.mxu0 0.0
        %1569 = vmatprep.subr.mxu0 0.0
        %1570 = vmatpush1.msra.mxu0 0.0
        %1571 = vmatprep.subr.mxu0 0.0
        %1572 = vmatpush1.msra.mxu0 0.0
        %1573 = vmatprep.subr.mxu0 0.0
        %1574 = vmatpush1.msra.mxu0 0.0
        %1575 = vmatprep.subr.mxu0 0.0
        %1576 = vmatpush1.msra.mxu0 0.0
        %1577 = vmatprep.subr.mxu0 0.0
        %1578 = vmatpush1.msra.mxu0 0.0
        %1579 = vmatprep.subr.mxu0 0.0
        %1580 = vmatpush1.msra.mxu0 0.0
        %1581 = vmatprep.subr.mxu0 0.0
        %1582 = vmatpush1.msra.mxu0 0.0
        %1583 = vmatprep.mubr.f32.mxu0 0.0
        %1584 = vmatmul.mubr.f32.gmra.mrb[0].mxu0 %v1517
        %v1585 = vpop.f32.mrb[0].mxu0
        %v1586 = vadd.f32 0.0, %v1585
        %v1587 = vpop.f32.mrb[0].mxu0
        %v1588 = vadd.f32 0.0, %v1587
        %1589 = vdwg.mxu0
        %1590 = vmatprep.subr.mxu0 %v1494
        %1591 = vmatpush1.msra.mxu0 %v1493
        %1592 = vmatprep.subr.mxu0 %v1498
        %1593 = vmatpush1.msra.mxu0 %v1497
        %1594 = vmatprep.subr.mxu0 %v1502
        %1595 = vmatpush1.msra.mxu0 %v1501
        %1596 = vmatprep.subr.mxu0 %v1506
        %1597 = vmatpush1.msra.mxu0 %v1505
        %1598 = vmatprep.subr.mxu0 0.0
        %1599 = vmatpush1.msra.mxu0 0.0
        %1600 = vmatprep.subr.mxu0 0.0
        %1601 = vmatpush1.msra.mxu0 0.0
        %1602 = vmatprep.subr.mxu0 0.0
        %1603 = vmatpush1.msra.mxu0 0.0
        %1604 = vmatprep.subr.mxu0 0.0
        %1605 = vmatpush1.msra.mxu0 0.0
        %1606 = vmatprep.subr.mxu0 0.0
        %1607 = vmatpush1.msra.mxu0 0.0
        %1608 = vmatprep.subr.mxu0 0.0
        %1609 = vmatpush1.msra.mxu0 0.0
        %1610 = vmatprep.subr.mxu0 0.0
        %1611 = vmatpush1.msra.mxu0 0.0
        %1612 = vmatprep.subr.mxu0 0.0
        %1613 = vmatpush1.msra.mxu0 0.0
        %1614 = vmatprep.subr.mxu0 0.0
        %1615 = vmatpush1.msra.mxu0 0.0
        %1616 = vmatprep.subr.mxu0 0.0
        %1617 = vmatpush1.msra.mxu0 0.0
        %1618 = vmatprep.subr.mxu0 0.0
        %1619 = vmatpush1.msra.mxu0 0.0
        %1620 = vmatprep.subr.mxu0 0.0
        %1621 = vmatpush1.msra.mxu0 0.0
        %1622 = vmatprep.subr.mxu0 0.0
        %1623 = vmatpush1.msra.mxu0 0.0
        %1624 = vmatprep.subr.mxu0 0.0
        %1625 = vmatpush1.msra.mxu0 0.0
        %1626 = vmatprep.subr.mxu0 0.0
        %1627 = vmatpush1.msra.mxu0 0.0
        %1628 = vmatprep.subr.mxu0 0.0
        %1629 = vmatpush1.msra.mxu0 0.0
        %1630 = vmatprep.subr.mxu0 0.0
        %1631 = vmatpush1.msra.mxu0 0.0
        %1632 = vmatprep.subr.mxu0 0.0
        %1633 = vmatpush1.msra.mxu0 0.0
        %1634 = vmatprep.subr.mxu0 0.0
        %1635 = vmatpush1.msra.mxu0 0.0
        %1636 = vmatprep.subr.mxu0 0.0
        %1637 = vmatpush1.msra.mxu0 0.0
        %1638 = vmatprep.subr.mxu0 0.0
        %1639 = vmatpush1.msra.mxu0 0.0
        %1640 = vmatprep.subr.mxu0 0.0
        %1641 = vmatpush1.msra.mxu0 0.0
        %1642 = vmatprep.subr.mxu0 0.0
        %1643 = vmatpush1.msra.mxu0 0.0
        %1644 = vmatprep.subr.mxu0 0.0
        %1645 = vmatpush1.msra.mxu0 0.0
        %1646 = vmatprep.subr.mxu0 0.0
        %1647 = vmatpush1.msra.mxu0 0.0
        %1648 = vmatprep.subr.mxu0 0.0
        %1649 = vmatpush1.msra.mxu0 0.0
        %1650 = vmatprep.subr.mxu0 0.0
        %1651 = vmatpush1.msra.mxu0 0.0
        %1652 = vmatprep.subr.mxu0 0.0
        %1653 = vmatpush1.msra.mxu0 0.0
        %1654 = vmatprep.mubr.f32.mxu0 0.0
        %1655 = vmatmul.mubr.f32.gmra.mrb[0].mxu0 %v1517
        %v1656 = vpop.f32.mrb[0].mxu0
        %v1657 = vadd.f32 0.0, %v1656
        %v1658 = vpop.f32.mrb[0].mxu0
        %v1659 = vadd.f32 0.0, %v1658
        %1660 = vdwg.mxu0
        %1661 = vmatprep.subr.mxu0 %v1500
        %1662 = vmatpush1.msra.mxu0 %v1499
        %1663 = vmatprep.subr.mxu0 %v1504
        %1664 = vmatpush1.msra.mxu0 %v1503
        %1665 = vmatprep.subr.mxu0 %v1508
        %1666 = vmatpush1.msra.mxu0 %v1507
        %1667 = vmatprep.subr.mxu0 %v1512
        %1668 = vmatpush1.msra.mxu0 %v1511
        %1669 = vmatprep.subr.mxu0 0.0
        %1670 = vmatpush1.msra.mxu0 0.0
        %1671 = vmatprep.subr.mxu0 0.0
        %1672 = vmatpush1.msra.mxu0 0.0
        %1673 = vmatprep.subr.mxu0 0.0
        %1674 = vmatpush1.msra.mxu0 0.0
        %1675 = vmatprep.subr.mxu0 0.0
        %1676 = vmatpush1.msra.mxu0 0.0
        %1677 = vmatprep.subr.mxu0 0.0
        %1678 = vmatpush1.msra.mxu0 0.0
        %1679 = vmatprep.subr.mxu0 0.0
        %1680 = vmatpush1.msra.mxu0 0.0
        %1681 = vmatprep.subr.mxu0 0.0
        %1682 = vmatpush1.msra.mxu0 0.0
        %1683 = vmatprep.subr.mxu0 0.0
        %1684 = vmatpush1.msra.mxu0 0.0
        %1685 = vmatprep.subr.mxu0 0.0
        %1686 = vmatpush1.msra.mxu0 0.0
        %1687 = vmatprep.subr.mxu0 0.0
        %1688 = vmatpush1.msra.mxu0 0.0
        %1689 = vmatprep.subr.mxu0 0.0
        %1690 = vmatpush1.msra.mxu0 0.0
        %1691 = vmatprep.subr.mxu0 0.0
        %1692 = vmatpush1.msra.mxu0 0.0
        %1693 = vmatprep.subr.mxu0 0.0
        %1694 = vmatpush1.msra.mxu0 0.0
        %1695 = vmatprep.subr.mxu0 0.0
        %1696 = vmatpush1.msra.mxu0 0.0
        %1697 = vmatprep.subr.mxu0 0.0
        %1698 = vmatpush1.msra.mxu0 0.0
        %1699 = vmatprep.subr.mxu0 0.0
        %1700 = vmatpush1.msra.mxu0 0.0
        %1701 = vmatprep.subr.mxu0 0.0
        %1702 = vmatpush1.msra.mxu0 0.0
        %1703 = vmatprep.subr.mxu0 0.0
        %1704 = vmatpush1.msra.mxu0 0.0
        %1705 = vmatprep.subr.mxu0 0.0
        %1706 = vmatpush1.msra.mxu0 0.0
        %1707 = vmatprep.subr.mxu0 0.0
        %1708 = vmatpush1.msra.mxu0 0.0
        %1709 = vmatprep.subr.mxu0 0.0
        %1710 = vmatpush1.msra.mxu0 0.0
        %1711 = vmatprep.subr.mxu0 0.0
        %1712 = vmatpush1.msra.mxu0 0.0
        %1713 = vmatprep.subr.mxu0 0.0
        %1714 = vmatpush1.msra.mxu0 0.0
        %1715 = vmatprep.subr.mxu0 0.0
        %1716 = vmatpush1.msra.mxu0 0.0
        %1717 = vmatprep.subr.mxu0 0.0
        %1718 = vmatpush1.msra.mxu0 0.0
        %1719 = vmatprep.subr.mxu0 0.0
        %1720 = vmatpush1.msra.mxu0 0.0
        %1721 = vmatprep.subr.mxu0 0.0
        %1722 = vmatpush1.msra.mxu0 0.0
        %1723 = vmatprep.subr.mxu0 0.0
        %1724 = vmatpush1.msra.mxu0 0.0
        %1725 = vmatprep.mubr.f32.mxu0 0.0
        %1726 = vmatmul.mubr.f32.gmra.mrb[0].mxu0 %v1517
        %v1727 = vpop.f32.mrb[0].mxu0
        %v1728 = vadd.f32 0.0, %v1727
        %v1729 = vpop.f32.mrb[0].mxu0
        %v1730 = vadd.f32 0.0, %v1729
        %1731 = vdwg.mxu0
        %1732 = vmatprep.subr.mxu0 %v1502
        %1733 = vmatpush1.msra.mxu0 %v1501
        %1734 = vmatprep.subr.mxu0 %v1506
        %1735 = vmatpush1.msra.mxu0 %v1505
        %1736 = vmatprep.subr.mxu0 %v1510
        %1737 = vmatpush1.msra.mxu0 %v1509
        %1738 = vmatprep.subr.mxu0 %v1514
        %1739 = vmatpush1.msra.mxu0 %v1513
        %1740 = vmatprep.subr.mxu0 0.0
        %1741 = vmatpush1.msra.mxu0 0.0
        %1742 = vmatprep.subr.mxu0 0.0
        %1743 = vmatpush1.msra.mxu0 0.0
        %1744 = vmatprep.subr.mxu0 0.0
        %1745 = vmatpush1.msra.mxu0 0.0
        %1746 = vmatprep.subr.mxu0 0.0
        %1747 = vmatpush1.msra.mxu0 0.0
        %1748 = vmatprep.subr.mxu0 0.0
        %1749 = vmatpush1.msra.mxu0 0.0
        %1750 = vmatprep.subr.mxu0 0.0
        %1751 = vmatpush1.msra.mxu0 0.0
        %1752 = vmatprep.subr.mxu0 0.0
        %1753 = vmatpush1.msra.mxu0 0.0
        %1754 = vmatprep.subr.mxu0 0.0
        %1755 = vmatpush1.msra.mxu0 0.0
        %1756 = vmatprep.subr.mxu0 0.0
        %1757 = vmatpush1.msra.mxu0 0.0
        %1758 = vmatprep.subr.mxu0 0.0
        %1759 = vmatpush1.msra.mxu0 0.0
        %1760 = vmatprep.subr.mxu0 0.0
        %1761 = vmatpush1.msra.mxu0 0.0
        %1762 = vmatprep.subr.mxu0 0.0
        %1763 = vmatpush1.msra.mxu0 0.0
        %1764 = vmatprep.subr.mxu0 0.0
        %1765 = vmatpush1.msra.mxu0 0.0
        %1766 = vmatprep.subr.mxu0 0.0
        %1767 = vmatpush1.msra.mxu0 0.0
        %1768 = vmatprep.subr.mxu0 0.0
        %1769 = vmatpush1.msra.mxu0 0.0
        %1770 = vmatprep.subr.mxu0 0.0
        %1771 = vmatpush1.msra.mxu0 0.0
        %1772 = vmatprep.subr.mxu0 0.0
        %1773 = vmatpush1.msra.mxu0 0.0
        %1774 = vmatprep.subr.mxu0 0.0
        %1775 = vmatpush1.msra.mxu0 0.0
        %1776 = vmatprep.subr.mxu0 0.0
        %1777 = vmatpush1.msra.mxu0 0.0
        %1778 = vmatprep.subr.mxu0 0.0
        %1779 = vmatpush1.msra.mxu0 0.0
        %1780 = vmatprep.subr.mxu0 0.0
        %1781 = vmatpush1.msra.mxu0 0.0
        %1782 = vmatprep.subr.mxu0 0.0
        %1783 = vmatpush1.msra.mxu0 0.0
        %1784 = vmatprep.subr.mxu0 0.0
        %1785 = vmatpush1.msra.mxu0 0.0
        %1786 = vmatprep.subr.mxu0 0.0
        %1787 = vmatpush1.msra.mxu0 0.0
        %1788 = vmatprep.subr.mxu0 0.0
        %1789 = vmatpush1.msra.mxu0 0.0
        %1790 = vmatprep.subr.mxu0 0.0
        %1791 = vmatpush1.msra.mxu0 0.0
        %1792 = vmatprep.subr.mxu0 0.0
        %1793 = vmatpush1.msra.mxu0 0.0
        %1794 = vmatprep.subr.mxu0 0.0
        %1795 = vmatpush1.msra.mxu0 0.0
        %1796 = vmatprep.mubr.f32.mxu0 0.0
        %1797 = vmatmul.mubr.f32.gmra.mrb[0].mxu0 %v1517
        %v1798 = vpop.f32.mrb[0].mxu0
        %v1799 = vadd.f32 0.0, %v1798
        %v1800 = vpop.f32.mrb[0].mxu0
        %v1801 = vadd.f32 0.0, %v1800
        %1802 = vdwg.mxu0
        %v1811 = vrot.slane %v1586, 4
        %v1812 = vrot.slane %v1588, 4
        %v1813 = vrot.slane %v1657, 4
        %v1814 = vrot.slane %v1659, 4
        %v1815 = vrot.slane %v1728, 4
        %v1816 = vrot.slane %v1730, 4
        %v1817 = vrot.slane %v1799, 4
        %v1818 = vrot.slane %v1801, 4
        %v1819 = vcombine.low %v1586, %v1588
        %v1820 = vcombine.low %v1657, %v1659
        %v1821 = vcombine.low %v1728, %v1730
        %v1822 = vcombine.low %v1799, %v1801
        %v1823 = vcombine.low %v1811, %v1812
        %v1824 = vcombine.low %v1813, %v1814
        %v1825 = vcombine.low %v1815, %v1816
        %v1826 = vcombine.low %v1817, %v1818
        %1835 = vst [vmem:[%s217] sm:$0xff] %v1819
        %1836 = vst [vmem:[%s217 + $0x8] sm:$0xff] %v1820
        %1837 = vst [vmem:[%s217 + $0x10] sm:$0xff] %v1821
        %1838 = vst [vmem:[%s217 + $0x18] sm:$0xff] %v1822
        %1839 = vst [vmem:[%s217 + $0x20] sm:$0xff] %v1823
        %1840 = vst [vmem:[%s217 + $0x28] sm:$0xff] %v1824
        %1841 = vst [vmem:[%s217 + $0x30] sm:$0xff] %v1825
        %1842 = vst [vmem:[%s217 + $0x38] sm:$0xff] %v1826
        %s1843 = sand.u32 %s137, 1
        %s1844 = scalar_lea.sflag [#allocation3], %s1843
        %s1845 = sand.u32 %s137, 1
        %s1846 = smul.addr %s1845, 64
        %s1847 = scalar_lea.vmem [#allocation2], %s1846
        // Predicated region
        $region41: #{tpu_custom_call.1} parent=39 // pred_check
          %p1848 = pneg %p147
        $region42: #{tpu_custom_call.1} parent=39 // pred_check_branch
          %1850 = sbr.rel (%p1848) target = $region44
        $region43: #{tpu_custom_call.1} parent=39 // pred_region
          %s1852 = ssub.s32 1024, 1024
          %1853 = vsyncadd %s1844, %s1852
          %s1854 = smul.addr %s19, 16
          %s1855 = smul.addr %s1854, 64
          %s1856 = scalar_lea.hbm %s5, %s1855
          %s1858 = sshll.u32 %s1847, 4
          %s1859 = int_to_ptr.vmem [resolvable:$true] %s1858
          %1861 = dma.vmem_to_hbm [thread:$0]  %s1859, 1024, %s1856, %s1844
        $region44: #{tpu_custom_call.1} parent=39 // pred_fallthru
          _
      $region40: #{tpu_custom_call.1} parent=5 // pred_fallthru
        _
      %p1862 = scmp.le.s32.totalorder 2, %s14
      // Predicated region
      $region45: #{tpu_custom_call.1} parent=5 // pred_check
        %p1863 = pneg %p1862
      $region46: #{tpu_custom_call.1} parent=5 // pred_check_branch
        %1865 = sbr.rel (%p1863) target = $region48
      $region47: #{tpu_custom_call.1} parent=5 // pred_region
        %s1866 = ssub.s32 %s14, 2
        // Predicated region
        $region49: #{tpu_custom_call.1} parent=47 // pred_check
          %p1867 = pneg %p153
        $region50: #{tpu_custom_call.1} parent=47 // pred_check_branch
          %1869 = sbr.rel (%p1867) target = $region52
        $region51: #{tpu_custom_call.1} parent=47 // pred_region
          %s1870 = sand.u32 %s138, 1
          %s1871 = scalar_lea.sflag [#allocation3], %s1870
          %s1872 = sand.u32 %s138, 1
          %s1873 = smul.addr %s1872, 64
          %s1874 = scalar_lea.vmem [#allocation2], %s1873
          %1875 = dma.done %s1871, 1024
        $region52: #{tpu_custom_call.1} parent=47 // pred_fallthru
          _
      $region48: #{tpu_custom_call.1} parent=5 // pred_fallthru
        _
    $region6: #{tpu_custom_call.1} parent=1 // loop_footer
      %s18 = sadd.s32 1, %s14
    $region7: #{tpu_custom_call.1} parent=1 // loop_footer_branch
      %13 = sbr.rel target = $region3
    $region8: #{tpu_custom_call.1} parent=1 // loop_exit
      _
    %1876 = vsyncpa [#allocation3], 1
    %s1877 = scalar_lea.sflag [#allocation3], 1
    %1878 = vsyncpa %s1877, 1

</llo_original>
